<compile_context>
chip_gen: v7x
topology: tpu7x:2x2x1
jax: 0.10.0
libtpu: 0.0.40
codegen_flags: <defaults>
</compile_context>

<pallas_src>
import functools

import jax
import jax.numpy as jnp
from jax import lax
from jax.experimental import pallas as pl
from jax.experimental.pallas import tpu as pltpu


def _attn_survival_kernel(x_ref, wvu_ref, bvu_ref, ww_ref, bw_ref,
                          wr_ref, br_ref, wt_ref, bt_ref,
                          risk_ref, time_ref,
                          m_sc, l_sc, acc_sc,
                          *, n_rows, block_rows, needs_mask):
    i = pl.program_id(0)

    @pl.when(i == 0)
    def _init():
        m_sc[...] = jnp.full_like(m_sc, -jnp.inf)
        l_sc[...] = jnp.zeros_like(l_sc)
        acc_sc[...] = jnp.zeros_like(acc_sc)

    # x tile straight from HBM in bf16 — no f32 copy, no mask on full tiles.
    xb = x_ref[...]                                              # (tm, L) bf16
    if needs_mask:
        # Only compiled when N % tm != 0: zero padded rows so OOB garbage
        # (possibly NaN) cannot leak into the p^T @ x contraction.
        row = i * block_rows + lax.broadcasted_iota(jnp.int32, (block_rows, 1), 0)
        valid = row < n_rows                                     # (tm, 1)
        xb = jnp.where(valid, xb, jnp.zeros((), xb.dtype))

    # Fused gated-attention matmul: [Wv | Wu] in one (L, 2D) bf16 weight.
    d = wvu_ref.shape[1] // 2
    vu = (jnp.dot(xb, wvu_ref[...], preferred_element_type=jnp.float32)
          + bvu_ref[...])                                        # (tm, 2D) f32
    gated = jnp.tanh(vu[:, :d]) * jax.nn.sigmoid(vu[:, d:])      # (tm, D) f32

    # Attention logits. K==1 (default): VPU multiply + XLU lane reduce, f32.
    k_heads = ww_ref.shape[0]
    if k_heads == 1:
        s = jnp.sum(gated * ww_ref[...], axis=-1, keepdims=True) + bw_ref[...]
    else:
        s = lax.dot_general(gated, ww_ref[...], (((1,), (1,)), ((), ())),
                            preferred_element_type=jnp.float32) + bw_ref[...]
    if needs_mask:
        s = jnp.where(valid, s, -jnp.inf)                        # (tm, K)

    # Online softmax over N (per head k), accumulating sum_n p[n,k]*x[n,:].
    m_prev = m_sc[...]                                           # (1, K)
    m_new = jnp.maximum(m_prev, s.max(axis=0, keepdims=True))    # (1, K)
    alpha = jnp.exp(m_prev - m_new)                              # (1, K)
    p = jnp.exp(s - m_new)                                       # (tm, K)
    l_sc[...] = alpha * l_sc[...] + p.sum(axis=0, keepdims=True)
    acc_sc[...] = alpha.T * acc_sc[...] + lax.dot_general(
        p.astype(xb.dtype), xb, (((0,), (0,)), ((), ())),        # p^T @ x -> (K, L)
        preferred_element_type=jnp.float32)
    m_sc[...] = m_new

    @pl.when(i == pl.num_programs(0) - 1)
    def _finalize():
        afeat = acc_sc[...] / l_sc[...].T                        # (K, L) f32
        # Tiny 1-output heads: keep in f32 on the VPU (no 1-lane MXU dots).
        risk = jnp.sum(afeat * wr_ref[...], axis=-1, keepdims=True) + br_ref[...]
        stime = jnp.maximum(
            jnp.sum(afeat * wt_ref[...], axis=-1, keepdims=True) + bt_ref[...],
            0.0) + 1e-6
        risk_ref[...] = risk.astype(risk_ref.dtype)
        time_ref[...] = stime.astype(time_ref.dtype)


@functools.partial(jax.jit, static_argnames=("block_rows",))
def attention_with_survival(x, wvu, bvu, ww, bw, wr, br, wt, bt,
                            *, block_rows=1024):
    """x: (N, L) bf16 (cast once outside jit). Prepped params (see
    prepare_params): wvu (L,2D) bf16, bvu (1,2D) f32, ww (K,D) f32, bw (1,K) f32,
    wr/wt (1,L) f32, br/bt (1,1) f32.
    Returns {'risk_score': (K,1), 'survival_time': (K,1)} in f32."""
    N, L = x.shape
    D2 = wvu.shape[1]
    K = ww.shape[0]

    if N <= block_rows:
        tm = N                       # single full-array tile
    else:
        assert block_rows % 8 == 0, "row tile must be a multiple of 8 when tiling"
        tm = block_rows
    grid = (pl.cdiv(N, tm),)
    needs_mask = (N % tm) != 0       # static: mask code only compiled if needed

    kernel = functools.partial(_attn_survival_kernel, n_rows=N,
                               block_rows=tm, needs_mask=needs_mask)

    flops = (2 * N * L * D2 + 5 * N * (D2 // 2)
             + 2 * N * (D2 // 2) * K + 2 * K * N * L + 4 * K * L)
    transcendentals = N * D2 + N * K
    bytes_accessed = (x.size * x.dtype.itemsize
                      + sum(a.size * a.dtype.itemsize
                            for a in (wvu, bvu, ww, bw, wr, br, wt, bt))
                      + 2 * K * 4)

    risk, stime = pl.pallas_call(
        kernel,
        out_shape=(jax.ShapeDtypeStruct((K, 1), jnp.float32),
                   jax.ShapeDtypeStruct((K, 1), jnp.float32)),
        grid_spec=pltpu.PrefetchScalarGridSpec(
            num_scalar_prefetch=0,
            grid=grid,
            in_specs=[
                pl.BlockSpec((tm, L), lambda i: (i, 0)),        # x row tile (streamed)
                pl.BlockSpec((L, D2), lambda i: (0, 0)),        # [Wv|Wu] fused (resident)
                pl.BlockSpec((1, D2), lambda i: (0, 0)),        # [bv|bu] (f32)
                pl.BlockSpec((K, D2 // 2), lambda i: (0, 0)),   # Ww rows (f32)
                pl.BlockSpec((1, K), lambda i: (0, 0)),         # bw
                pl.BlockSpec((1, L), lambda i: (0, 0)),         # Wr row (risk head, f32)
                pl.BlockSpec((1, 1), lambda i: (0, 0)),         # br
                pl.BlockSpec((1, L), lambda i: (0, 0)),         # Wt row (time head, f32)
                pl.BlockSpec((1, 1), lambda i: (0, 0)),         # bt
            ],
            out_specs=[
                pl.BlockSpec((K, 1), lambda i: (0, 0)),         # risk_score
                pl.BlockSpec((K, 1), lambda i: (0, 0)),         # survival_time
            ],
            scratch_shapes=[
                pltpu.VMEM((1, K), jnp.float32),                # running max m
                pltpu.VMEM((1, K), jnp.float32),                # running denom l
                pltpu.VMEM((K, L), jnp.float32),                # weighted-sum accumulator
            ],
        ),
        compiler_params=pltpu.CompilerParams(
            dimension_semantics=("arbitrary",),                 # online-softmax carry over N
        ),
        cost_estimate=pl.CostEstimate(flops=flops,
                                      transcendentals=transcendentals,
                                      bytes_accessed=bytes_accessed),
    )(x, wvu, bvu, ww, bw, wr, br, wt, bt)

    return {"risk_score": risk, "survival_time": stime}


def prepare_params(wv, bv, wu, bu, ww, bw, wr, br, wt, bt):
    """One-time parameter prep (call OUTSIDE jit). Inputs are in (in, out)
    layout (i.e. already transposed from PyTorch's (out, in))."""
    wvu = jnp.concatenate([wv, wu], axis=1).astype(jnp.bfloat16)   # (L, 2D)
    bvu = jnp.concatenate([bv, bu], axis=1).astype(jnp.float32)    # (1, 2D)
    return (wvu, bvu,
            ww.T.astype(jnp.float32),    # (K, D)
            bw.astype(jnp.float32),      # (1, K)
            wr.T.astype(jnp.float32),    # (1, L)
            br.astype(jnp.float32),      # (1, 1)
            wt.T.astype(jnp.float32),    # (1, L)
            bt.astype(jnp.float32))      # (1, 1)


def attention_survival_ref(x_bf16, wv, bv, wu, bu, ww, bw, wr, br, wt, bt):
    """Pure-JAX f32 reference using the same effective (bf16-rounded) values
    of x / Wv / Wu that the kernel consumes."""
    x = x_bf16.astype(jnp.float32)
    wv = wv.astype(jnp.bfloat16).astype(jnp.float32)
    wu = wu.astype(jnp.bfloat16).astype(jnp.float32)
    av = jnp.tanh(x @ wv + bv)
    au = jax.nn.sigmoid(x @ wu + bu)
    a = (av * au) @ ww + bw                 # (N, K)
    a = jax.nn.softmax(a.T, axis=1)         # (K, N), softmax over instances
    afeat = a @ x                           # (K, L)
    risk = afeat @ wr + br
    stime = jnp.maximum(afeat @ wt + bt, 0.0) + 1e-6
    return {"risk_score": risk, "survival_time": stime}


if __name__ == "__main__":
    # Module defaults: L=512, D=128, K=1. N=300 exercises the masked multi-tile
    # online-softmax path when block_rows=128 and the single-tile path otherwise.
    N, L, D, K = 300, 512, 128, 1

    key = jax.random.PRNGKey(0)
    ks = jax.random.split(key, 11)

    x = jax.random.normal(ks[0], (N, L), dtype=jnp.float32)

    def linear_params(kw, kb, fan_in, fan_out):
        bound = 1.0 / (fan_in ** 0.5)
        w = jax.random.uniform(kw, (fan_in, fan_out), jnp.float32, -bound, bound)
        b = jax.random.uniform(kb, (1, fan_out), jnp.float32, -bound, bound)
        return w, b

    wv, bv = linear_params(ks[1], ks[2], L, D)    # attention_V
    wu, bu = linear_params(ks[3], ks[4], L, D)    # attention_U
    ww, bw = linear_params(ks[5], ks[6], D, K)    # attention_weights
    wr, br = linear_params(ks[7], ks[8], L, 1)    # risk_fc
    wt, bt = linear_params(ks[9], ks[10], L, 1)   # time_fc

    # One-time prep OUTSIDE jit: bf16 activations + fused/cast weights.
    x_bf16 = x.astype(jnp.bfloat16)
    params = prepare_params(wv, bv, wu, bu, ww, bw, wr, br, wt, bt)

    # Single-tile path (N <= block_rows) and tiled path (grid=3, masked tail).
    out_single = attention_with_survival(x_bf16, *params)
    out_tiled = attention_with_survival(x_bf16, *params, block_rows=128)
    jax.block_until_ready((out_single, out_tiled))

    ref = attention_survival_ref(x_bf16, wv, bv, wu, bu, ww, bw, wr, br, wt, bt)

    for name in ("risk_score", "survival_time"):
        for out in (out_single, out_tiled):
            assert out[name].shape == (K, 1), (name, out[name].shape)
            assert jnp.allclose(out[name], ref[name], atol=3e-2, rtol=3e-2), (
                name, out[name], ref[name])

    print("KERNEL_OK")
</pallas_src>

<mosaic_0001>
module attributes {stable_mosaic.version = 11 : i64} {
  func.func @_attn_survival_kernel(%arg0: i32, %arg1: memref<300x512xbf16, #tpu.memory_space<vmem>>, %arg2: memref<512x256xbf16, #tpu.memory_space<vmem>>, %arg3: memref<1x256xf32, #tpu.memory_space<vmem>>, %arg4: memref<1x128xf32, #tpu.memory_space<vmem>>, %arg5: memref<1x1xf32, #tpu.memory_space<vmem>>, %arg6: memref<1x512xf32, #tpu.memory_space<vmem>>, %arg7: memref<1x1xf32, #tpu.memory_space<vmem>>, %arg8: memref<1x512xf32, #tpu.memory_space<vmem>>, %arg9: memref<1x1xf32, #tpu.memory_space<vmem>>, %arg10: memref<1x1xf32, #tpu.memory_space<vmem>>, %arg11: memref<1x1xf32, #tpu.memory_space<vmem>>, %arg12: memref<1x1xf32, #tpu.memory_space<vmem>>, %arg13: memref<1x1xf32, #tpu.memory_space<vmem>>, %arg14: memref<1x512xf32, #tpu.memory_space<vmem>>) attributes {dimension_semantics = [#tpu.dimension_semantics<arbitrary>], iteration_bounds = array<i64: 1>, scalar_prefetch = 0 : i64, scratch_operands = 3 : i64, tpu.core_type = #tpu.core_type<tc>, window_params = [{transform_indices = @transform_0, window_bounds = array<i64: 300, 512>}, {pipeline_mode = #tpu.pipeline_mode<synchronous>, transform_indices = @transform_1, window_bounds = array<i64: 512, 256>}, {pipeline_mode = #tpu.pipeline_mode<synchronous>, transform_indices = @transform_2, window_bounds = array<i64: 1, 256>}, {pipeline_mode = #tpu.pipeline_mode<synchronous>, transform_indices = @transform_3, window_bounds = array<i64: 1, 128>}, {pipeline_mode = #tpu.pipeline_mode<synchronous>, transform_indices = @transform_4, window_bounds = array<i64: 1, 1>}, {pipeline_mode = #tpu.pipeline_mode<synchronous>, transform_indices = @transform_5, window_bounds = array<i64: 1, 512>}, {pipeline_mode = #tpu.pipeline_mode<synchronous>, transform_indices = @transform_6, window_bounds = array<i64: 1, 1>}, {pipeline_mode = #tpu.pipeline_mode<synchronous>, transform_indices = @transform_7, window_bounds = array<i64: 1, 512>}, {pipeline_mode = #tpu.pipeline_mode<synchronous>, transform_indices = @transform_8, window_bounds = array<i64: 1, 1>}, {pipeline_mode = #tpu.pipeline_mode<synchronous>, transform_indices = @transform_9, window_bounds = array<i64: 1, 1>}, {pipeline_mode = #tpu.pipeline_mode<synchronous>, transform_indices = @transform_10, window_bounds = array<i64: 1, 1>}]} {
    %c0_i32 = arith.constant 0 : i32
    %0 = arith.cmpi eq, %arg0, %c0_i32 : i32
    %1 = arith.extui %0 : i1 to i32
    %c0_i32_0 = arith.constant 0 : i32
    %2 = arith.cmpi ne, %1, %c0_i32_0 : i32
    scf.if %2 {
      %cst_29 = arith.constant 0xFF800000 : f32
      %53 = vector.broadcast %cst_29 : f32 to vector<1x1xf32>
      %c0_30 = arith.constant 0 : index
      %c0_31 = arith.constant 0 : index
      %54 = vector.load %arg12[%c0_30, %c0_31] : memref<1x1xf32, #tpu.memory_space<vmem>>, vector<1x1xf32>
      tpu.vector_store %arg12[%c0_30, %c0_31], %53 {strides = array<i32>} : memref<1x1xf32, #tpu.memory_space<vmem>>, vector<1x1xf32>,
      %cst_32 = arith.constant 0.000000e+00 : f32
      %55 = vector.broadcast %cst_32 : f32 to vector<1x1xf32>
      %c0_33 = arith.constant 0 : index
      %c0_34 = arith.constant 0 : index
      %56 = vector.load %arg13[%c0_33, %c0_34] : memref<1x1xf32, #tpu.memory_space<vmem>>, vector<1x1xf32>
      tpu.vector_store %arg13[%c0_33, %c0_34], %55 {strides = array<i32>} : memref<1x1xf32, #tpu.memory_space<vmem>>, vector<1x1xf32>,
      %cst_35 = arith.constant 0.000000e+00 : f32
      %57 = vector.broadcast %cst_35 : f32 to vector<1x512xf32>
      %c0_36 = arith.constant 0 : index
      %c0_37 = arith.constant 0 : index
      %58 = vector.load %arg14[%c0_36, %c0_37] : memref<1x512xf32, #tpu.memory_space<vmem>>, vector<1x512xf32>
      tpu.vector_store %arg14[%c0_36, %c0_37], %57 {strides = array<i32>} : memref<1x512xf32, #tpu.memory_space<vmem>>, vector<1x512xf32>,
    } else {
    }
    %c0 = arith.constant 0 : index
    %c0_1 = arith.constant 0 : index
    %3 = vector.load %arg1[%c0, %c0_1] : memref<300x512xbf16, #tpu.memory_space<vmem>>, vector<300x512xbf16>
    %c0_2 = arith.constant 0 : index
    %c0_3 = arith.constant 0 : index
    %4 = vector.load %arg2[%c0_2, %c0_3] : memref<512x256xbf16, #tpu.memory_space<vmem>>, vector<512x256xbf16>
    %cst = arith.constant dense<0.000000e+00> : vector<300x256xf32>
    %5 = tpu.matmul %3, %4, %cst {dimension_numbers = #tpu.dot_dimension_numbers<[1], [0], [0], [1], [0, 0, 1, 1], [], []>} : vector<300x512xbf16>, vector<512x256xbf16>, vector<300x256xf32> -> vector<300x256xf32>
    %c0_4 = arith.constant 0 : index
    %c0_5 = arith.constant 0 : index
    %6 = vector.load %arg3[%c0_4, %c0_5] : memref<1x256xf32, #tpu.memory_space<vmem>>, vector<1x256xf32>
    %7 = vector.broadcast %6 : vector<1x256xf32> to vector<300x256xf32>
    %8 = arith.addf %5, %7 : vector<300x256xf32>
    %9 = vector.extract_strided_slice %8 {offsets = [0, 0], sizes = [300, 128], strides = [1, 1]} : vector<300x256xf32> to vector<300x128xf32>
    %10 = math.tanh %9 : vector<300x128xf32>
    %11 = vector.extract_strided_slice %8 {offsets = [0, 128], sizes = [300, 128], strides = [1, 1]} : vector<300x256xf32> to vector<300x128xf32>
    %12 = arith.negf %11 : vector<300x128xf32>
    %13 = math.exp %12 : vector<300x128xf32>
    %cst_6 = arith.constant 1.000000e+00 : f32
    %14 = vector.broadcast %cst_6 : f32 to vector<300x128xf32>
    %15 = arith.addf %14, %13 : vector<300x128xf32>
    %16 = arith.divf %14, %15 : vector<300x128xf32>
    %17 = arith.mulf %10, %16 : vector<300x128xf32>
    %c0_7 = arith.constant 0 : index
    %c0_8 = arith.constant 0 : index
    %18 = vector.load %arg4[%c0_7, %c0_8] : memref<1x128xf32, #tpu.memory_space<vmem>>, vector<1x128xf32>
    %19 = vector.broadcast %18 : vector<1x128xf32> to vector<300x128xf32>
    %20 = arith.mulf %17, %19 : vector<300x128xf32>
    %cst_9 = arith.constant dense<0.000000e+00> : vector<300xf32>
    %21 = vector.multi_reduction <add>, %20, %cst_9 [1] : vector<300x128xf32> to vector<300xf32>
    %22 = vector.shape_cast %21 : vector<300xf32> to vector<300x1xf32>
    %c0_10 = arith.constant 0 : index
    %c0_11 = arith.constant 0 : index
    %23 = vector.load %arg5[%c0_10, %c0_11] : memref<1x1xf32, #tpu.memory_space<vmem>>, vector<1x1xf32>
    %24 = vector.broadcast %23 : vector<1x1xf32> to vector<300x1xf32>
    %25 = arith.addf %22, %24 : vector<300x1xf32>
    %c0_12 = arith.constant 0 : index
    %c0_13 = arith.constant 0 : index
    %26 = vector.load %arg12[%c0_12, %c0_13] : memref<1x1xf32, #tpu.memory_space<vmem>>, vector<1x1xf32>
    %cst_14 = arith.constant dense<0xFF800000> : vector<1xf32>
    %27 = vector.multi_reduction <maximumf>, %25, %cst_14 [0] : vector<300x1xf32> to vector<1xf32>
    %28 = vector.shape_cast %27 : vector<1xf32> to vector<1x1xf32>
    %29 = arith.maximumf %26, %28 : vector<1x1xf32>
    %30 = arith.subf %26, %29 : vector<1x1xf32>
    %31 = math.exp %30 : vector<1x1xf32>
    %32 = vector.broadcast %29 : vector<1x1xf32> to vector<300x1xf32>
    %33 = arith.subf %25, %32 : vector<300x1xf32>
    %34 = math.exp %33 : vector<300x1xf32>
    %c0_15 = arith.constant 0 : index
    %c0_16 = arith.constant 0 : index
    %35 = vector.load %arg13[%c0_15, %c0_16] : memref<1x1xf32, #tpu.memory_space<vmem>>, vector<1x1xf32>
    %36 = arith.mulf %31, %35 : vector<1x1xf32>
    %cst_17 = arith.constant dense<0.000000e+00> : vector<1xf32>
    %37 = vector.multi_reduction <add>, %34, %cst_17 [0] : vector<300x1xf32> to vector<1xf32>
    %38 = vector.shape_cast %37 : vector<1xf32> to vector<1x1xf32>
    %39 = arith.addf %36, %38 : vector<1x1xf32>
    %c0_18 = arith.constant 0 : index
    %c0_19 = arith.constant 0 : index
    %40 = vector.load %arg13[%c0_18, %c0_19] : memref<1x1xf32, #tpu.memory_space<vmem>>, vector<1x1xf32>
    tpu.vector_store %arg13[%c0_18, %c0_19], %39 {strides = array<i32>} : memref<1x1xf32, #tpu.memory_space<vmem>>, vector<1x1xf32>,
    %41 = tpu.transpose %31, [1, 0] : vector<1x1xf32> -> vector<1x1xf32>
    %c0_20 = arith.constant 0 : index
    %c0_21 = arith.constant 0 : index
    %42 = vector.load %arg14[%c0_20, %c0_21] : memref<1x512xf32, #tpu.memory_space<vmem>>, vector<1x512xf32>
    %43 = vector.broadcast %41 : vector<1x1xf32> to vector<1x512xf32>
    %44 = arith.mulf %43, %42 : vector<1x512xf32>
    %45 = arith.truncf %34 : vector<300x1xf32> to vector<300x1xbf16>
    %cst_22 = arith.constant dense<0.000000e+00> : vector<1x512xf32>
    %46 = tpu.matmul %45, %3, %cst_22 {dimension_numbers = #tpu.dot_dimension_numbers<[0], [0], [1], [1], [0, 1, 1, 1], [], []>} : vector<300x1xbf16>, vector<300x512xbf16>, vector<1x512xf32> -> vector<1x512xf32>
    %47 = arith.addf %44, %46 : vector<1x512xf32>
    %c0_23 = arith.constant 0 : index
    %c0_24 = arith.constant 0 : index
    %48 = vector.load %arg14[%c0_23, %c0_24] : memref<1x512xf32, #tpu.memory_space<vmem>>, vector<1x512xf32>
    tpu.vector_store %arg14[%c0_23, %c0_24], %47 {strides = array<i32>} : memref<1x512xf32, #tpu.memory_space<vmem>>, vector<1x512xf32>,
    %c0_25 = arith.constant 0 : index
    %c0_26 = arith.constant 0 : index
    %49 = vector.load %arg12[%c0_25, %c0_26] : memref<1x1xf32, #tpu.memory_space<vmem>>, vector<1x1xf32>
    tpu.vector_store %arg12[%c0_25, %c0_26], %29 {strides = array<i32>} : memref<1x1xf32, #tpu.memory_space<vmem>>, vector<1x1xf32>,
    %c0_i32_27 = arith.constant 0 : i32
    %50 = arith.cmpi eq, %arg0, %c0_i32_27 : i32
    %51 = arith.extui %50 : i1 to i32
    %c0_i32_28 = arith.constant 0 : i32
    %52 = arith.cmpi ne, %51, %c0_i32_28 : i32
    scf.if %52 {
      %c0_29 = arith.constant 0 : index
      %c0_30 = arith.constant 0 : index
      %53 = vector.load %arg14[%c0_29, %c0_30] : memref<1x512xf32, #tpu.memory_space<vmem>>, vector<1x512xf32>
      %c0_31 = arith.constant 0 : index
      %c0_32 = arith.constant 0 : index
      %54 = vector.load %arg13[%c0_31, %c0_32] : memref<1x1xf32, #tpu.memory_space<vmem>>, vector<1x1xf32>
      %55 = tpu.transpose %54, [1, 0] : vector<1x1xf32> -> vector<1x1xf32>
      %56 = vector.broadcast %55 : vector<1x1xf32> to vector<1x512xf32>
      %57 = arith.divf %53, %56 : vector<1x512xf32>
      %c0_33 = arith.constant 0 : index
      %c0_34 = arith.constant 0 : index
      %58 = vector.load %arg6[%c0_33, %c0_34] : memref<1x512xf32, #tpu.memory_space<vmem>>, vector<1x512xf32>
      %59 = arith.mulf %57, %58 : vector<1x512xf32>
      %cst_35 = arith.constant dense<0.000000e+00> : vector<1xf32>
      %60 = vector.multi_reduction <add>, %59, %cst_35 [1] : vector<1x512xf32> to vector<1xf32>
      %61 = vector.shape_cast %60 : vector<1xf32> to vector<1x1xf32>
      %c0_36 = arith.constant 0 : index
      %c0_37 = arith.constant 0 : index
      %62 = vector.load %arg7[%c0_36, %c0_37] : memref<1x1xf32, #tpu.memory_space<vmem>>, vector<1x1xf32>
      %63 = arith.addf %61, %62 : vector<1x1xf32>
      %c0_38 = arith.constant 0 : index
      %c0_39 = arith.constant 0 : index
      %64 = vector.load %arg8[%c0_38, %c0_39] : memref<1x512xf32, #tpu.memory_space<vmem>>, vector<1x512xf32>
      %65 = arith.mulf %57, %64 : vector<1x512xf32>
      %cst_40 = arith.constant dense<0.000000e+00> : vector<1xf32>
      %66 = vector.multi_reduction <add>, %65, %cst_40 [1] : vector<1x512xf32> to vector<1xf32>
      %67 = vector.shape_cast %66 : vector<1xf32> to vector<1x1xf32>
      %c0_41 = arith.constant 0 : index
      %c0_42 = arith.constant 0 : index
      %68 = vector.load %arg9[%c0_41, %c0_42] : memref<1x1xf32, #tpu.memory_space<vmem>>, vector<1x1xf32>
      %69 = arith.addf %67, %68 : vector<1x1xf32>
      %cst_43 = arith.constant 0.000000e+00 : f32
      %70 = vector.broadcast %cst_43 : f32 to vector<1x1xf32>
      %71 = arith.maximumf %69, %70 : vector<1x1xf32>
      %cst_44 = arith.constant 9.99999997E-7 : f32
      %72 = vector.broadcast %cst_44 : f32 to vector<1x1xf32>
      %73 = arith.addf %71, %72 : vector<1x1xf32>
      %c0_45 = arith.constant 0 : index
      %c0_46 = arith.constant 0 : index
      %74 = vector.load %arg10[%c0_45, %c0_46] : memref<1x1xf32, #tpu.memory_space<vmem>>, vector<1x1xf32>
      tpu.vector_store %arg10[%c0_45, %c0_46], %63 {strides = array<i32>} : memref<1x1xf32, #tpu.memory_space<vmem>>, vector<1x1xf32>,
      %c0_47 = arith.constant 0 : index
      %c0_48 = arith.constant 0 : index
      %75 = vector.load %arg11[%c0_47, %c0_48] : memref<1x1xf32, #tpu.memory_space<vmem>>, vector<1x1xf32>
      tpu.vector_store %arg11[%c0_47, %c0_48], %73 {strides = array<i32>} : memref<1x1xf32, #tpu.memory_space<vmem>>, vector<1x1xf32>,
    } else {
    }
    return
  }
  func.func @transform_0(%arg0: i32) -> (i32, i32) {
    %c0_i32 = arith.constant 0 : i32
    %c0_i32_0 = arith.constant 0 : i32
    return %arg0, %c0_i32 : i32, i32
  }
  func.func @transform_1(%arg0: i32) -> (i32, i32) {
    %c0_i32 = arith.constant 0 : i32
    %c0_i32_0 = arith.constant 0 : i32
    %c0_i32_1 = arith.constant 0 : i32
    return %c0_i32, %c0_i32_0 : i32, i32
  }
  func.func @transform_2(%arg0: i32) -> (i32, i32) {
    %c0_i32 = arith.constant 0 : i32
    %c0_i32_0 = arith.constant 0 : i32
    %c0_i32_1 = arith.constant 0 : i32
    return %c0_i32, %c0_i32_0 : i32, i32
  }
  func.func @transform_3(%arg0: i32) -> (i32, i32) {
    %c0_i32 = arith.constant 0 : i32
    %c0_i32_0 = arith.constant 0 : i32
    %c0_i32_1 = arith.constant 0 : i32
    return %c0_i32, %c0_i32_0 : i32, i32
  }
  func.func @transform_4(%arg0: i32) -> (i32, i32) {
    %c0_i32 = arith.constant 0 : i32
    %c0_i32_0 = arith.constant 0 : i32
    %c0_i32_1 = arith.constant 0 : i32
    return %c0_i32, %c0_i32_0 : i32, i32
  }
  func.func @transform_5(%arg0: i32) -> (i32, i32) {
    %c0_i32 = arith.constant 0 : i32
    %c0_i32_0 = arith.constant 0 : i32
    %c0_i32_1 = arith.constant 0 : i32
    return %c0_i32, %c0_i32_0 : i32, i32
  }
  func.func @transform_6(%arg0: i32) -> (i32, i32) {
    %c0_i32 = arith.constant 0 : i32
    %c0_i32_0 = arith.constant 0 : i32
    %c0_i32_1 = arith.constant 0 : i32
    return %c0_i32, %c0_i32_0 : i32, i32
  }
  func.func @transform_7(%arg0: i32) -> (i32, i32) {
    %c0_i32 = arith.constant 0 : i32
    %c0_i32_0 = arith.constant 0 : i32
    %c0_i32_1 = arith.constant 0 : i32
    return %c0_i32, %c0_i32_0 : i32, i32
  }
  func.func @transform_8(%arg0: i32) -> (i32, i32) {
    %c0_i32 = arith.constant 0 : i32
    %c0_i32_0 = arith.constant 0 : i32
    %c0_i32_1 = arith.constant 0 : i32
    return %c0_i32, %c0_i32_0 : i32, i32
  }
  func.func @transform_9(%arg0: i32) -> (i32, i32) {
    %c0_i32 = arith.constant 0 : i32
    %c0_i32_0 = arith.constant 0 : i32
    %c0_i32_1 = arith.constant 0 : i32
    return %c0_i32, %c0_i32_0 : i32, i32
  }
  func.func @transform_10(%arg0: i32) -> (i32, i32) {
    %c0_i32 = arith.constant 0 : i32
    %c0_i32_0 = arith.constant 0 : i32
    %c0_i32_1 = arith.constant 0 : i32
    return %c0_i32, %c0_i32_0 : i32, i32
  }
}

</mosaic_0001>

<llo_original>
// kernel: attention_with_survival.1
$region0: #{attention_with_survival.1}
  #allocation0 [shape = 'u32[]', space=smem, size = 0x4, offset = 0x4, fixed_abs, tag = 'smem constant byte address 0x4 - core index']
  #allocation1 [shape = 'u32[144,128]{1,0:T(1,128)}', space=vmem, size = 0x12000, scoped, tag = 'internal scratch']
  #allocation2 [shape = 'f32[1,1]{1,0:T(1,128)}', space=vmem, size = 0x200, scoped, tag = 'scratch operand']
  #allocation3 [shape = 'f32[1,1]{1,0:T(1,128)}', space=vmem, size = 0x200, scoped, tag = 'scratch operand']
  #allocation4 [shape = 'f32[1,512]{1,0:T(1,128)}', space=vmem, size = 0x800, scoped, tag = 'scratch operand']
  #allocation5 [shape = 'f32[1,1]{1,0:T(1,128)S(1)}', space=vmem, size = 0x200, scoped, tag = 'scoped memory for attention_with_survival.1']
  #allocation6 [shape = 'f32[1,1]{1,0:T(1,128)S(1)}', space=vmem, size = 0x200, scoped, tag = 'scoped memory for attention_with_survival.1']
  #allocation7 [shape = 'f32[1,1]{1,0:T(1,128)S(1)}', space=vmem, size = 0x200, scoped, tag = 'scoped memory for attention_with_survival.1']
  %s0 = inlined_call_operand.hbm [shape: bf16[300,512], index: 0, kind: input, shape index: {}]
  %s1 = inlined_call_operand.hbm [shape: bf16[512,256], index: 1, kind: input, shape index: {}]
  %s2 = inlined_call_operand.vmem [shape: f32[1,256], index: 2, kind: input, shape index: {}]
  %s3 = inlined_call_operand.vmem [shape: f32[1,128], index: 3, kind: input, shape index: {}]
  %s4 = inlined_call_operand.<no memory space> [shape: f32[1,1], index: 4, kind: input, shape index: {}]
  %s5 = inlined_call_operand.vmem [shape: f32[1,512], index: 5, kind: input, shape index: {}]
  %s6 = inlined_call_operand.<no memory space> [shape: f32[1,1], index: 6, kind: input, shape index: {}]
  %s7 = inlined_call_operand.vmem [shape: f32[1,512], index: 7, kind: input, shape index: {}]
  %s8 = inlined_call_operand.<no memory space> [shape: f32[1,1], index: 8, kind: input, shape index: {}]
  %s9 = inlined_call_operand.hbm [shape: f32[1,1], index: 9, kind: output, shape index: {0}]
  %s10 = inlined_call_operand.hbm [shape: f32[1,1], index: 10, kind: output, shape index: {1}]
  %11 = xla_tuple %s9, %s10
  %s12 = sld [smem:[#allocation0]]
  $region70: #{attention_with_survival.1} parent=0
    _
  %s14 = ssub.s32 1, %s12
  %s15 = scalar_select 0, %s14, %s12
  %v16 = vstv %s4
  %17 = vst [vmem:[#allocation5] sm:$0x1] %v16
  %v18 = vstv %s6
  %19 = vst [vmem:[#allocation6] sm:$0x1] %v18
  %v20 = vstv %s8
  %21 = vst [vmem:[#allocation7] sm:$0x1] %v20
  $region1: #{attention_with_survival.1} parent=0
    #allocation8 [shape = 'u8[311296]{0}', space=vmem, size = 0x4c000, scoped, tag = 'input window, operand 0, single buffered']
    #allocation9 [shape = 's32[1]{0}', space=sflag, size = 0x4, scoped, tag = 'scoped memory for attention_with_survival.1']
    #allocation10 [shape = 's32[1]{0}', space=sflag, size = 0x4, scoped, tag = 'scoped memory for attention_with_survival.1']
    #allocation11 [shape = 'u8[262144]{0}', space=vmem, size = 0x40000, scoped, tag = 'input window, operand 1, single buffered']
    #allocation12 [shape = 's32[1]{0}', space=sflag, size = 0x4, scoped, tag = 'scoped memory for attention_with_survival.1']
    #allocation13 [shape = 'u8[512]{0}', space=vmem, size = 0x400, scoped, tag = 'output window, operand 0, single buffered']
    #allocation14 [shape = 'u8[512]{0}', space=vmem, size = 0x400, scoped, tag = 'output window, operand 1, single buffered']
    #allocation15 [shape = 's32[1]{0}', space=sflag, size = 0x4, scoped, tag = 'scoped memory for attention_with_survival.1']
    %22 = vsyncpa [#allocation9], 0
    %23 = vsyncpa [#allocation12], 0
    %24 = vsyncpa [#allocation10], 0
    %25 = vsyncpa [#allocation15], 0
    // Predicated region
    $region2: #{attention_with_survival.1} parent=1 // pred_check
      _
    $region3: #{attention_with_survival.1} parent=1 // pred_check_branch
      %27 = sbr.rel (0) target = $region5
    $region4: #{attention_with_survival.1} parent=1 // pred_region
      %s29 = ssub.s32 9728, 9728
      %30 = vsyncadd [#allocation9], %s29
      %s31 = sshll.u32 [#allocation8], 4
      %s32 = int_to_ptr.vmem [resolvable:$true] %s31
      %37 = dma.hbm_to_vmem [thread:$0]  %s0, 9728, %s32, [#allocation9], 256, 256, 16
    $region5: #{attention_with_survival.1} parent=1 // pred_fallthru
      _
    // Predicated region
    $region6: #{attention_with_survival.1} parent=1 // pred_check
      _
    $region7: #{attention_with_survival.1} parent=1 // pred_check_branch
      %39 = sbr.rel (0) target = $region9
    $region8: #{attention_with_survival.1} parent=1 // pred_region
      %s41 = ssub.s32 8192, 8192
      %42 = vsyncadd [#allocation12], %s41
      %s43 = sshll.u32 [#allocation11], 4
      %s44 = int_to_ptr.vmem [resolvable:$true] %s43
      %49 = dma.hbm_to_vmem [thread:$0]  %s1, 8192, %s44, [#allocation12], 128, 128, 8
    $region9: #{attention_with_survival.1} parent=1 // pred_fallthru
      _
    // Predicated region
    $region10: #{attention_with_survival.1} parent=1 // pred_check
      _
    $region11: #{attention_with_survival.1} parent=1 // pred_check_branch
      %51 = sbr.rel (0) target = $region13
    $region12: #{attention_with_survival.1} parent=1 // pred_region
      _
    $region13: #{attention_with_survival.1} parent=1 // pred_fallthru
      _
    // Predicated region
    $region14: #{attention_with_survival.1} parent=1 // pred_check
      _
    $region15: #{attention_with_survival.1} parent=1 // pred_check_branch
      %53 = sbr.rel (0) target = $region17
    $region16: #{attention_with_survival.1} parent=1 // pred_region
      _
    $region17: #{attention_with_survival.1} parent=1 // pred_fallthru
      _
    // Predicated region
    $region18: #{attention_with_survival.1} parent=1 // pred_check
      _
    $region19: #{attention_with_survival.1} parent=1 // pred_check_branch
      %55 = sbr.rel (0) target = $region21
    $region20: #{attention_with_survival.1} parent=1 // pred_region
      _
    $region21: #{attention_with_survival.1} parent=1 // pred_fallthru
      _
    // Predicated region
    $region22: #{attention_with_survival.1} parent=1 // pred_check
      _
    $region23: #{attention_with_survival.1} parent=1 // pred_check_branch
      %57 = sbr.rel (0) target = $region25
    $region24: #{attention_with_survival.1} parent=1 // pred_region
      _
    $region25: #{attention_with_survival.1} parent=1 // pred_fallthru
      _
    // Predicated region
    $region26: #{attention_with_survival.1} parent=1 // pred_check
      _
    $region27: #{attention_with_survival.1} parent=1 // pred_check_branch
      %59 = sbr.rel (0) target = $region29
    $region28: #{attention_with_survival.1} parent=1 // pred_region
      _
    $region29: #{attention_with_survival.1} parent=1 // pred_fallthru
      _
    // Predicated region
    $region30: #{attention_with_survival.1} parent=1 // pred_check
      _
    $region31: #{attention_with_survival.1} parent=1 // pred_check_branch
      %61 = sbr.rel (0) target = $region33
    $region32: #{attention_with_survival.1} parent=1 // pred_region
      _
    $region33: #{attention_with_survival.1} parent=1 // pred_fallthru
      _
    // Predicated region
    $region34: #{attention_with_survival.1} parent=1 // pred_check
      _
    $region35: #{attention_with_survival.1} parent=1 // pred_check_branch
      %63 = sbr.rel (0) target = $region37
    $region36: #{attention_with_survival.1} parent=1 // pred_region
      _
    $region37: #{attention_with_survival.1} parent=1 // pred_fallthru
      _
    // Predicated region
    $region38: #{attention_with_survival.1} parent=1 // pred_check
      _
    $region39: #{attention_with_survival.1} parent=1 // pred_check_branch
      %65 = sbr.rel (0) target = $region41
    $region40: #{attention_with_survival.1} parent=1 // pred_region
      %66 = dma.done [#allocation9], 9728
    $region41: #{attention_with_survival.1} parent=1 // pred_fallthru
      _
    // Predicated region
    $region42: #{attention_with_survival.1} parent=1 // pred_check
      _
    $region43: #{attention_with_survival.1} parent=1 // pred_check_branch
      %68 = sbr.rel (0) target = $region45
    $region44: #{attention_with_survival.1} parent=1 // pred_region
      %69 = dma.done [#allocation12], 8192
    $region45: #{attention_with_survival.1} parent=1 // pred_fallthru
      _
    %p71 = scmp.eq.s32.totalorder 0, 0
    // Predicated region
    $region46: #{attention_with_survival.1} parent=1 // pred_check
      %p72 = pneg %p71
    $region47: #{attention_with_survival.1} parent=1 // pred_check_branch
      %74 = sbr.rel (%p72) target = $region49
    $region48: #{attention_with_survival.1} parent=1 // pred_region
      %vm75 = vcmask 0
      %76 = vst.msk [vmem:[#allocation2] sm:$0x1] %vm75, -inf
      %77 = vst.msk [vmem:[#allocation3] sm:$0x1] %vm75, 0.0
      %v78 = vlaneseq
      %vm79 = vcmp.ge.s32.totalorder %v78, 0
      %vm80 = vcmp.lt.s32.totalorder %v78, 512
      %vm81 = vmand %vm79, %vm80
      %82 = vst.msk [vmem:[#allocation4] sm:$0xf] %vm81, 0.0
    $region49: #{attention_with_survival.1} parent=1 // pred_fallthru
      _
    %v83 = vld [vmem:[#allocation8] sm:$0xff]
    %v84 = vld [vmem:[#allocation8 + $0x8] sm:$0xff]
    %v85 = vld [vmem:[#allocation8 + $0x10] sm:$0xff]
    %v86 = vld [vmem:[#allocation8 + $0x18] sm:$0xff]
    %v87 = vld [vmem:[#allocation8 + $0x20] sm:$0xff]
    %v88 = vld [vmem:[#allocation8 + $0x28] sm:$0xff]
    %v89 = vld [vmem:[#allocation8 + $0x30] sm:$0xff]
    %v90 = vld [vmem:[#allocation8 + $0x38] sm:$0xff]
    %v91 = vld [vmem:[#allocation8 + $0x40] sm:$0xff]
    %v92 = vld [vmem:[#allocation8 + $0x48] sm:$0xff]
    %v93 = vld [vmem:[#allocation8 + $0x50] sm:$0xff]
    %v94 = vld [vmem:[#allocation8 + $0x58] sm:$0xff]
    %v95 = vld [vmem:[#allocation8 + $0x60] sm:$0xff]
    %v96 = vld [vmem:[#allocation8 + $0x68] sm:$0xff]
    %v97 = vld [vmem:[#allocation8 + $0x70] sm:$0xff]
    %v98 = vld [vmem:[#allocation8 + $0x78] sm:$0xff]
    %v99 = vld [vmem:[#allocation8 + $0x80] sm:$0xff]
    %v100 = vld [vmem:[#allocation8 + $0x88] sm:$0xff]
    %v101 = vld [vmem:[#allocation8 + $0x90] sm:$0xff]
    %v102 = vld [vmem:[#allocation8 + $0x98] sm:$0xff]
    %v103 = vld [vmem:[#allocation8 + $0xa0] sm:$0xff]
    %v104 = vld [vmem:[#allocation8 + $0xa8] sm:$0xff]
    %v105 = vld [vmem:[#allocation8 + $0xb0] sm:$0xff]
    %v106 = vld [vmem:[#allocation8 + $0xb8] sm:$0xff]
    %v107 = vld [vmem:[#allocation8 + $0xc0] sm:$0xff]
    %v108 = vld [vmem:[#allocation8 + $0xc8] sm:$0xff]
    %v109 = vld [vmem:[#allocation8 + $0xd0] sm:$0xff]
    %v110 = vld [vmem:[#allocation8 + $0xd8] sm:$0xff]
    %v111 = vld [vmem:[#allocation8 + $0xe0] sm:$0xff]
    %v112 = vld [vmem:[#allocation8 + $0xe8] sm:$0xff]
    %v113 = vld [vmem:[#allocation8 + $0xf0] sm:$0xff]
    %v114 = vld [vmem:[#allocation8 + $0xf8] sm:$0xff]
    %v115 = vld [vmem:[#allocation8 + $0x100] sm:$0xff]
    %v116 = vld [vmem:[#allocation8 + $0x108] sm:$0xff]
    %v117 = vld [vmem:[#allocation8 + $0x110] sm:$0xff]
    %v118 = vld [vmem:[#allocation8 + $0x118] sm:$0xff]
    %v119 = vld [vmem:[#allocation8 + $0x120] sm:$0xff]
    %v120 = vld [vmem:[#allocation8 + $0x128] sm:$0xff]
    %v121 = vld [vmem:[#allocation8 + $0x130] sm:$0xff]
    %v122 = vld [vmem:[#allocation8 + $0x138] sm:$0xff]
    %v123 = vld [vmem:[#allocation8 + $0x140] sm:$0xff]
    %v124 = vld [vmem:[#allocation8 + $0x148] sm:$0xff]
    %v125 = vld [vmem:[#allocation8 + $0x150] sm:$0xff]
    %v126 = vld [vmem:[#allocation8 + $0x158] sm:$0xff]
    %v127 = vld [vmem:[#allocation8 + $0x160] sm:$0xff]
    %v128 = vld [vmem:[#allocation8 + $0x168] sm:$0xff]
    %v129 = vld [vmem:[#allocation8 + $0x170] sm:$0xff]
    %v130 = vld [vmem:[#allocation8 + $0x178] sm:$0xff]
    %v131 = vld [vmem:[#allocation8 + $0x180] sm:$0xff]
    %v132 = vld [vmem:[#allocation8 + $0x188] sm:$0xff]
    %v133 = vld [vmem:[#allocation8 + $0x190] sm:$0xff]
    %v134 = vld [vmem:[#allocation8 + $0x198] sm:$0xff]
    %v135 = vld [vmem:[#allocation8 + $0x1a0] sm:$0xff]
    %v136 = vld [vmem:[#allocation8 + $0x1a8] sm:$0xff]
    %v137 = vld [vmem:[#allocation8 + $0x1b0] sm:$0xff]
    %v138 = vld [vmem:[#allocation8 + $0x1b8] sm:$0xff]
    %v139 = vld [vmem:[#allocation8 + $0x1c0] sm:$0xff]
    %v140 = vld [vmem:[#allocation8 + $0x1c8] sm:$0xff]
    %v141 = vld [vmem:[#allocation8 + $0x1d0] sm:$0xff]
    %v142 = vld [vmem:[#allocation8 + $0x1d8] sm:$0xff]
    %v143 = vld [vmem:[#allocation8 + $0x1e0] sm:$0xff]
    %v144 = vld [vmem:[#allocation8 + $0x1e8] sm:$0xff]
    %v145 = vld [vmem:[#allocation8 + $0x1f0] sm:$0xff]
    %v146 = vld [vmem:[#allocation8 + $0x1f8] sm:$0xff]
    %v147 = vld [vmem:[#allocation8 + $0x200] sm:$0xff]
    %v148 = vld [vmem:[#allocation8 + $0x208] sm:$0xff]
    %v149 = vld [vmem:[#allocation8 + $0x210] sm:$0xff]
    %v150 = vld [vmem:[#allocation8 + $0x218] sm:$0xff]
    %v151 = vld [vmem:[#allocation8 + $0x220] sm:$0xff]
    %v152 = vld [vmem:[#allocation8 + $0x228] sm:$0xff]
    %v153 = vld [vmem:[#allocation8 + $0x230] sm:$0xff]
    %v154 = vld [vmem:[#allocation8 + $0x238] sm:$0xff]
    %v155 = vld [vmem:[#allocation8 + $0x240] sm:$0xff]
    %v156 = vld [vmem:[#allocation8 + $0x248] sm:$0xff]
    %v157 = vld [vmem:[#allocation8 + $0x250] sm:$0x33]
    %v158 = vld [vmem:[#allocation8 + $0x258] sm:$0x33]
    %v159 = vld [vmem:[#allocation11] sm:$0xff]
    %v160 = vld [vmem:[#allocation11 + $0x8] sm:$0xff]
    %v161 = vld [vmem:[#allocation11 + $0x10] sm:$0xff]
    %v162 = vld [vmem:[#allocation11 + $0x18] sm:$0xff]
    %v163 = vld [vmem:[#allocation11 + $0x20] sm:$0xff]
    %v164 = vld [vmem:[#allocation11 + $0x28] sm:$0xff]
    %v165 = vld [vmem:[#allocation11 + $0x30] sm:$0xff]
    %v166 = vld [vmem:[#allocation11 + $0x38] sm:$0xff]
    %v167 = vld [vmem:[#allocation11 + $0x40] sm:$0xff]
    %v168 = vld [vmem:[#allocation11 + $0x48] sm:$0xff]
    %v169 = vld [vmem:[#allocation11 + $0x50] sm:$0xff]
    %v170 = vld [vmem:[#allocation11 + $0x58] sm:$0xff]
    %v171 = vld [vmem:[#allocation11 + $0x60] sm:$0xff]
    %v172 = vld [vmem:[#allocation11 + $0x68] sm:$0xff]
    %v173 = vld [vmem:[#allocation11 + $0x70] sm:$0xff]
    %v174 = vld [vmem:[#allocation11 + $0x78] sm:$0xff]
    %v175 = vld [vmem:[#allocation11 + $0x80] sm:$0xff]
    %v176 = vld [vmem:[#allocation11 + $0x88] sm:$0xff]
    %v177 = vld [vmem:[#allocation11 + $0x90] sm:$0xff]
    %v178 = vld [vmem:[#allocation11 + $0x98] sm:$0xff]
    %v179 = vld [vmem:[#allocation11 + $0xa0] sm:$0xff]
    %v180 = vld [vmem:[#allocation11 + $0xa8] sm:$0xff]
    %v181 = vld [vmem:[#allocation11 + $0xb0] sm:$0xff]
    %v182 = vld [vmem:[#allocation11 + $0xb8] sm:$0xff]
    %v183 = vld [vmem:[#allocation11 + $0xc0] sm:$0xff]
    %v184 = vld [vmem:[#allocation11 + $0xc8] sm:$0xff]
    %v185 = vld [vmem:[#allocation11 + $0xd0] sm:$0xff]
    %v186 = vld [vmem:[#allocation11 + $0xd8] sm:$0xff]
    %v187 = vld [vmem:[#allocation11 + $0xe0] sm:$0xff]
    %v188 = vld [vmem:[#allocation11 + $0xe8] sm:$0xff]
    %v189 = vld [vmem:[#allocation11 + $0xf0] sm:$0xff]
    %v190 = vld [vmem:[#allocation11 + $0xf8] sm:$0xff]
    %v191 = vld [vmem:[#allocation11 + $0x100] sm:$0xff]
    %v192 = vld [vmem:[#allocation11 + $0x108] sm:$0xff]
    %v193 = vld [vmem:[#allocation11 + $0x110] sm:$0xff]
    %v194 = vld [vmem:[#allocation11 + $0x118] sm:$0xff]
    %v195 = vld [vmem:[#allocation11 + $0x120] sm:$0xff]
    %v196 = vld [vmem:[#allocation11 + $0x128] sm:$0xff]
    %v197 = vld [vmem:[#allocation11 + $0x130] sm:$0xff]
    %v198 = vld [vmem:[#allocation11 + $0x138] sm:$0xff]
    %v199 = vld [vmem:[#allocation11 + $0x140] sm:$0xff]
    %v200 = vld [vmem:[#allocation11 + $0x148] sm:$0xff]
    %v201 = vld [vmem:[#allocation11 + $0x150] sm:$0xff]
    %v202 = vld [vmem:[#allocation11 + $0x158] sm:$0xff]
    %v203 = vld [vmem:[#allocation11 + $0x160] sm:$0xff]
    %v204 = vld [vmem:[#allocation11 + $0x168] sm:$0xff]
    %v205 = vld [vmem:[#allocation11 + $0x170] sm:$0xff]
    %v206 = vld [vmem:[#allocation11 + $0x178] sm:$0xff]
    %v207 = vld [vmem:[#allocation11 + $0x180] sm:$0xff]
    %v208 = vld [vmem:[#allocation11 + $0x188] sm:$0xff]
    %v209 = vld [vmem:[#allocation11 + $0x190] sm:$0xff]
    %v210 = vld [vmem:[#allocation11 + $0x198] sm:$0xff]
    %v211 = vld [vmem:[#allocation11 + $0x1a0] sm:$0xff]
    %v212 = vld [vmem:[#allocation11 + $0x1a8] sm:$0xff]
    %v213 = vld [vmem:[#allocation11 + $0x1b0] sm:$0xff]
    %v214 = vld [vmem:[#allocation11 + $0x1b8] sm:$0xff]
    %v215 = vld [vmem:[#allocation11 + $0x1c0] sm:$0xff]
    %v216 = vld [vmem:[#allocation11 + $0x1c8] sm:$0xff]
    %v217 = vld [vmem:[#allocation11 + $0x1d0] sm:$0xff]
    %v218 = vld [vmem:[#allocation11 + $0x1d8] sm:$0xff]
    %v219 = vld [vmem:[#allocation11 + $0x1e0] sm:$0xff]
    %v220 = vld [vmem:[#allocation11 + $0x1e8] sm:$0xff]
    %v221 = vld [vmem:[#allocation11 + $0x1f0] sm:$0xff]
    %v222 = vld [vmem:[#allocation11 + $0x1f8] sm:$0xff]
    %v223 = vld [vmem:[%s2] sm:$0x3]
    %v225 = vlaneseq
    %v226 = vshrl.u32 %v225, 7
    %v227 = vsub.s32 0, %v226
    %v228 = vrot.slane %v223, %v227
    %v229 = vlaneseq
    %v230 = vshrl.u32 %v229, 7
    %v231 = vsub.s32 1, %v230
    %v232 = vrot.slane %v223, %v231
    %v311 = vunpack.c.l.b16 %v83
    %v312 = vunpack.c.h.b16 %v83
    %v313 = vunpack.c.l.b16 %v84
    %v314 = vunpack.c.h.b16 %v84
    %v315 = vunpack.c.l.b16 %v85
    %v316 = vunpack.c.h.b16 %v85
    %v317 = vunpack.c.l.b16 %v86
    %v318 = vunpack.c.h.b16 %v86
    %v319 = vunpack.c.l.b16 %v87
    %v320 = vunpack.c.h.b16 %v87
    %v321 = vunpack.c.l.b16 %v88
    %v322 = vunpack.c.h.b16 %v88
    %v323 = vunpack.c.l.b16 %v89
    %v324 = vunpack.c.h.b16 %v89
    %v325 = vunpack.c.l.b16 %v90
    %v326 = vunpack.c.h.b16 %v90
    %v327 = vunpack.c.l.b16 %v91
    %v328 = vunpack.c.h.b16 %v91
    %v329 = vunpack.c.l.b16 %v92
    %v330 = vunpack.c.h.b16 %v92
    %v331 = vunpack.c.l.b16 %v93
    %v332 = vunpack.c.h.b16 %v93
    %v333 = vunpack.c.l.b16 %v94
    %v334 = vunpack.c.h.b16 %v94
    %v335 = vunpack.c.l.b16 %v95
    %v336 = vunpack.c.h.b16 %v95
    %v337 = vunpack.c.l.b16 %v96
    %v338 = vunpack.c.h.b16 %v96
    %v339 = vunpack.c.l.b16 %v97
    %v340 = vunpack.c.h.b16 %v97
    %v341 = vunpack.c.l.b16 %v98
    %v342 = vunpack.c.h.b16 %v98
    %v343 = vunpack.c.l.b16 %v99
    %v344 = vunpack.c.h.b16 %v99
    %v345 = vunpack.c.l.b16 %v100
    %v346 = vunpack.c.h.b16 %v100
    %v347 = vunpack.c.l.b16 %v101
    %v348 = vunpack.c.h.b16 %v101
    %v349 = vunpack.c.l.b16 %v102
    %v350 = vunpack.c.h.b16 %v102
    %v351 = vunpack.c.l.b16 %v103
    %v352 = vunpack.c.h.b16 %v103
    %v353 = vunpack.c.l.b16 %v104
    %v354 = vunpack.c.h.b16 %v104
    %v355 = vunpack.c.l.b16 %v105
    %v356 = vunpack.c.h.b16 %v105
    %v357 = vunpack.c.l.b16 %v106
    %v358 = vunpack.c.h.b16 %v106
    %v359 = vunpack.c.l.b16 %v107
    %v360 = vunpack.c.h.b16 %v107
    %v361 = vunpack.c.l.b16 %v108
    %v362 = vunpack.c.h.b16 %v108
    %v363 = vunpack.c.l.b16 %v109
    %v364 = vunpack.c.h.b16 %v109
    %v365 = vunpack.c.l.b16 %v110
    %v366 = vunpack.c.h.b16 %v110
    %v367 = vunpack.c.l.b16 %v111
    %v368 = vunpack.c.h.b16 %v111
    %v369 = vunpack.c.l.b16 %v112
    %v370 = vunpack.c.h.b16 %v112
    %v371 = vunpack.c.l.b16 %v113
    %v372 = vunpack.c.h.b16 %v113
    %v373 = vunpack.c.l.b16 %v114
    %v374 = vunpack.c.h.b16 %v114
    %v375 = vunpack.c.l.b16 %v115
    %v376 = vunpack.c.h.b16 %v115
    %v377 = vunpack.c.l.b16 %v116
    %v378 = vunpack.c.h.b16 %v116
    %v379 = vunpack.c.l.b16 %v117
    %v380 = vunpack.c.h.b16 %v117
    %v381 = vunpack.c.l.b16 %v118
    %v382 = vunpack.c.h.b16 %v118
    %v383 = vunpack.c.l.b16 %v119
    %v384 = vunpack.c.h.b16 %v119
    %v385 = vunpack.c.l.b16 %v120
    %v386 = vunpack.c.h.b16 %v120
    %v387 = vunpack.c.l.b16 %v121
    %v388 = vunpack.c.h.b16 %v121
    %v389 = vunpack.c.l.b16 %v122
    %v390 = vunpack.c.h.b16 %v122
    %v391 = vunpack.c.l.b16 %v123
    %v392 = vunpack.c.h.b16 %v123
    %v393 = vunpack.c.l.b16 %v124
    %v394 = vunpack.c.h.b16 %v124
    %v395 = vunpack.c.l.b16 %v125
    %v396 = vunpack.c.h.b16 %v125
    %v397 = vunpack.c.l.b16 %v126
    %v398 = vunpack.c.h.b16 %v126
    %v399 = vunpack.c.l.b16 %v127
    %v400 = vunpack.c.h.b16 %v127
    %v401 = vunpack.c.l.b16 %v128
    %v402 = vunpack.c.h.b16 %v128
    %v403 = vunpack.c.l.b16 %v129
    %v404 = vunpack.c.h.b16 %v129
    %v405 = vunpack.c.l.b16 %v130
    %v406 = vunpack.c.h.b16 %v130
    %v407 = vunpack.c.l.b16 %v131
    %v408 = vunpack.c.h.b16 %v131
    %v409 = vunpack.c.l.b16 %v132
    %v410 = vunpack.c.h.b16 %v132
    %v411 = vunpack.c.l.b16 %v133
    %v412 = vunpack.c.h.b16 %v133
    %v413 = vunpack.c.l.b16 %v134
    %v414 = vunpack.c.h.b16 %v134
    %v415 = vunpack.c.l.b16 %v135
    %v416 = vunpack.c.h.b16 %v135
    %v417 = vunpack.c.l.b16 %v136
    %v418 = vunpack.c.h.b16 %v136
    %v419 = vunpack.c.l.b16 %v137
    %v420 = vunpack.c.h.b16 %v137
    %v421 = vunpack.c.l.b16 %v138
    %v422 = vunpack.c.h.b16 %v138
    %v423 = vunpack.c.l.b16 %v139
    %v424 = vunpack.c.h.b16 %v139
    %v425 = vunpack.c.l.b16 %v140
    %v426 = vunpack.c.h.b16 %v140
    %v427 = vunpack.c.l.b16 %v141
    %v428 = vunpack.c.h.b16 %v141
    %v429 = vunpack.c.l.b16 %v142
    %v430 = vunpack.c.h.b16 %v142
    %v431 = vunpack.c.l.b16 %v143
    %v432 = vunpack.c.h.b16 %v143
    %v433 = vunpack.c.l.b16 %v144
    %v434 = vunpack.c.h.b16 %v144
    %v435 = vunpack.c.l.b16 %v145
    %v436 = vunpack.c.h.b16 %v145
    %v437 = vunpack.c.l.b16 %v146
    %v438 = vunpack.c.h.b16 %v146
    %v439 = vunpack.c.l.b16 %v147
    %v440 = vunpack.c.h.b16 %v147
    %v441 = vunpack.c.l.b16 %v148
    %v442 = vunpack.c.h.b16 %v148
    %v443 = vunpack.c.l.b16 %v149
    %v444 = vunpack.c.h.b16 %v149
    %v445 = vunpack.c.l.b16 %v150
    %v446 = vunpack.c.h.b16 %v150
    %v447 = vunpack.c.l.b16 %v151
    %v448 = vunpack.c.h.b16 %v151
    %v449 = vunpack.c.l.b16 %v152
    %v450 = vunpack.c.h.b16 %v152
    %v451 = vunpack.c.l.b16 %v153
    %v452 = vunpack.c.h.b16 %v153
    %v453 = vunpack.c.l.b16 %v154
    %v454 = vunpack.c.h.b16 %v154
    %v455 = vunpack.c.l.b16 %v155
    %v456 = vunpack.c.h.b16 %v155
    %v457 = vunpack.c.l.b16 %v156
    %v458 = vunpack.c.h.b16 %v156
    %v459 = vunpack.c.l.b16 %v157
    %v460 = vunpack.c.h.b16 %v157
    %v461 = vunpack.c.l.b16 %v158
    %v462 = vunpack.c.h.b16 %v158
    %v463 = vpack.c.b16 %v315, %v311
    %v464 = vpack.c.b16 %v316, %v312
    %v465 = vpack.c.b16 %v317, %v313
    %v466 = vpack.c.b16 %v318, %v314
    %v467 = vpack.c.b16 %v323, %v319
    %v468 = vpack.c.b16 %v324, %v320
    %v469 = vpack.c.b16 %v325, %v321
    %v470 = vpack.c.b16 %v326, %v322
    %v471 = vpack.c.b16 %v331, %v327
    %v472 = vpack.c.b16 %v332, %v328
    %v473 = vpack.c.b16 %v333, %v329
    %v474 = vpack.c.b16 %v334, %v330
    %v475 = vpack.c.b16 %v339, %v335
    %v476 = vpack.c.b16 %v340, %v336
    %v477 = vpack.c.b16 %v341, %v337
    %v478 = vpack.c.b16 %v342, %v338
    %v479 = vpack.c.b16 %v347, %v343
    %v480 = vpack.c.b16 %v348, %v344
    %v481 = vpack.c.b16 %v349, %v345
    %v482 = vpack.c.b16 %v350, %v346
    %v483 = vpack.c.b16 %v355, %v351
    %v484 = vpack.c.b16 %v356, %v352
    %v485 = vpack.c.b16 %v357, %v353
    %v486 = vpack.c.b16 %v358, %v354
    %v487 = vpack.c.b16 %v363, %v359
    %v488 = vpack.c.b16 %v364, %v360
    %v489 = vpack.c.b16 %v365, %v361
    %v490 = vpack.c.b16 %v366, %v362
    %v491 = vpack.c.b16 %v371, %v367
    %v492 = vpack.c.b16 %v372, %v368
    %v493 = vpack.c.b16 %v373, %v369
    %v494 = vpack.c.b16 %v374, %v370
    %v495 = vpack.c.b16 %v379, %v375
    %v496 = vpack.c.b16 %v380, %v376
    %v497 = vpack.c.b16 %v381, %v377
    %v498 = vpack.c.b16 %v382, %v378
    %v499 = vpack.c.b16 %v387, %v383
    %v500 = vpack.c.b16 %v388, %v384
    %v501 = vpack.c.b16 %v389, %v385
    %v502 = vpack.c.b16 %v390, %v386
    %v503 = vpack.c.b16 %v395, %v391
    %v504 = vpack.c.b16 %v396, %v392
    %v505 = vpack.c.b16 %v397, %v393
    %v506 = vpack.c.b16 %v398, %v394
    %v507 = vpack.c.b16 %v403, %v399
    %v508 = vpack.c.b16 %v404, %v400
    %v509 = vpack.c.b16 %v405, %v401
    %v510 = vpack.c.b16 %v406, %v402
    %v511 = vpack.c.b16 %v411, %v407
    %v512 = vpack.c.b16 %v412, %v408
    %v513 = vpack.c.b16 %v413, %v409
    %v514 = vpack.c.b16 %v414, %v410
    %v515 = vpack.c.b16 %v419, %v415
    %v516 = vpack.c.b16 %v420, %v416
    %v517 = vpack.c.b16 %v421, %v417
    %v518 = vpack.c.b16 %v422, %v418
    %v519 = vpack.c.b16 %v427, %v423
    %v520 = vpack.c.b16 %v428, %v424
    %v521 = vpack.c.b16 %v429, %v425
    %v522 = vpack.c.b16 %v430, %v426
    %v523 = vpack.c.b16 %v435, %v431
    %v524 = vpack.c.b16 %v436, %v432
    %v525 = vpack.c.b16 %v437, %v433
    %v526 = vpack.c.b16 %v438, %v434
    %v527 = vpack.c.b16 %v443, %v439
    %v528 = vpack.c.b16 %v444, %v440
    %v529 = vpack.c.b16 %v445, %v441
    %v530 = vpack.c.b16 %v446, %v442
    %v531 = vpack.c.b16 %v451, %v447
    %v532 = vpack.c.b16 %v452, %v448
    %v533 = vpack.c.b16 %v453, %v449
    %v534 = vpack.c.b16 %v454, %v450
    %v535 = vpack.c.b16 %v459, %v455
    %v536 = vpack.c.b16 %v460, %v456
    %v537 = vpack.c.b16 %v461, %v457
    %v538 = vpack.c.b16 %v462, %v458
    %v679 = vunpack.c.l.b16 %v159
    %v680 = vunpack.c.h.b16 %v159
    %v681 = vunpack.c.l.b16 %v160
    %v682 = vunpack.c.h.b16 %v160
    %v683 = vunpack.c.l.b16 %v161
    %v684 = vunpack.c.h.b16 %v161
    %v685 = vunpack.c.l.b16 %v162
    %v686 = vunpack.c.h.b16 %v162
    %v687 = vunpack.c.l.b16 %v163
    %v688 = vunpack.c.h.b16 %v163
    %v689 = vunpack.c.l.b16 %v164
    %v690 = vunpack.c.h.b16 %v164
    %v691 = vunpack.c.l.b16 %v165
    %v692 = vunpack.c.h.b16 %v165
    %v693 = vunpack.c.l.b16 %v166
    %v694 = vunpack.c.h.b16 %v166
    %v695 = vunpack.c.l.b16 %v167
    %v696 = vunpack.c.h.b16 %v167
    %v697 = vunpack.c.l.b16 %v168
    %v698 = vunpack.c.h.b16 %v168
    %v699 = vunpack.c.l.b16 %v169
    %v700 = vunpack.c.h.b16 %v169
    %v701 = vunpack.c.l.b16 %v170
    %v702 = vunpack.c.h.b16 %v170
    %v703 = vunpack.c.l.b16 %v171
    %v704 = vunpack.c.h.b16 %v171
    %v705 = vunpack.c.l.b16 %v172
    %v706 = vunpack.c.h.b16 %v172
    %v707 = vunpack.c.l.b16 %v173
    %v708 = vunpack.c.h.b16 %v173
    %v709 = vunpack.c.l.b16 %v174
    %v710 = vunpack.c.h.b16 %v174
    %v711 = vunpack.c.l.b16 %v175
    %v712 = vunpack.c.h.b16 %v175
    %v713 = vunpack.c.l.b16 %v176
    %v714 = vunpack.c.h.b16 %v176
    %v715 = vunpack.c.l.b16 %v177
    %v716 = vunpack.c.h.b16 %v177
    %v717 = vunpack.c.l.b16 %v178
    %v718 = vunpack.c.h.b16 %v178
    %v719 = vunpack.c.l.b16 %v179
    %v720 = vunpack.c.h.b16 %v179
    %v721 = vunpack.c.l.b16 %v180
    %v722 = vunpack.c.h.b16 %v180
    %v723 = vunpack.c.l.b16 %v181
    %v724 = vunpack.c.h.b16 %v181
    %v725 = vunpack.c.l.b16 %v182
    %v726 = vunpack.c.h.b16 %v182
    %v727 = vunpack.c.l.b16 %v183
    %v728 = vunpack.c.h.b16 %v183
    %v729 = vunpack.c.l.b16 %v184
    %v730 = vunpack.c.h.b16 %v184
    %v731 = vunpack.c.l.b16 %v185
    %v732 = vunpack.c.h.b16 %v185
    %v733 = vunpack.c.l.b16 %v186
    %v734 = vunpack.c.h.b16 %v186
    %v735 = vunpack.c.l.b16 %v187
    %v736 = vunpack.c.h.b16 %v187
    %v737 = vunpack.c.l.b16 %v188
    %v738 = vunpack.c.h.b16 %v188
    %v739 = vunpack.c.l.b16 %v189
    %v740 = vunpack.c.h.b16 %v189
    %v741 = vunpack.c.l.b16 %v190
    %v742 = vunpack.c.h.b16 %v190
    %v743 = vunpack.c.l.b16 %v191
    %v744 = vunpack.c.h.b16 %v191
    %v745 = vunpack.c.l.b16 %v192
    %v746 = vunpack.c.h.b16 %v192
    %v747 = vunpack.c.l.b16 %v193
    %v748 = vunpack.c.h.b16 %v193
    %v749 = vunpack.c.l.b16 %v194
    %v750 = vunpack.c.h.b16 %v194
    %v751 = vunpack.c.l.b16 %v195
    %v752 = vunpack.c.h.b16 %v195
    %v753 = vunpack.c.l.b16 %v196
    %v754 = vunpack.c.h.b16 %v196
    %v755 = vunpack.c.l.b16 %v197
    %v756 = vunpack.c.h.b16 %v197
    %v757 = vunpack.c.l.b16 %v198
    %v758 = vunpack.c.h.b16 %v198
    %v759 = vunpack.c.l.b16 %v199
    %v760 = vunpack.c.h.b16 %v199
    %v761 = vunpack.c.l.b16 %v200
    %v762 = vunpack.c.h.b16 %v200
    %v763 = vunpack.c.l.b16 %v201
    %v764 = vunpack.c.h.b16 %v201
    %v765 = vunpack.c.l.b16 %v202
    %v766 = vunpack.c.h.b16 %v202
    %v767 = vunpack.c.l.b16 %v203
    %v768 = vunpack.c.h.b16 %v203
    %v769 = vunpack.c.l.b16 %v204
    %v770 = vunpack.c.h.b16 %v204
    %v771 = vunpack.c.l.b16 %v205
    %v772 = vunpack.c.h.b16 %v205
    %v773 = vunpack.c.l.b16 %v206
    %v774 = vunpack.c.h.b16 %v206
    %v775 = vunpack.c.l.b16 %v207
    %v776 = vunpack.c.h.b16 %v207
    %v777 = vunpack.c.l.b16 %v208
    %v778 = vunpack.c.h.b16 %v208
    %v779 = vunpack.c.l.b16 %v209
    %v780 = vunpack.c.h.b16 %v209
    %v781 = vunpack.c.l.b16 %v210
    %v782 = vunpack.c.h.b16 %v210
    %v783 = vunpack.c.l.b16 %v211
    %v784 = vunpack.c.h.b16 %v211
    %v785 = vunpack.c.l.b16 %v212
    %v786 = vunpack.c.h.b16 %v212
    %v787 = vunpack.c.l.b16 %v213
    %v788 = vunpack.c.h.b16 %v213
    %v789 = vunpack.c.l.b16 %v214
    %v790 = vunpack.c.h.b16 %v214
    %v791 = vunpack.c.l.b16 %v215
    %v792 = vunpack.c.h.b16 %v215
    %v793 = vunpack.c.l.b16 %v216
    %v794 = vunpack.c.h.b16 %v216
    %v795 = vunpack.c.l.b16 %v217
    %v796 = vunpack.c.h.b16 %v217
    %v797 = vunpack.c.l.b16 %v218
    %v798 = vunpack.c.h.b16 %v218
    %v799 = vunpack.c.l.b16 %v219
    %v800 = vunpack.c.h.b16 %v219
    %v801 = vunpack.c.l.b16 %v220
    %v802 = vunpack.c.h.b16 %v220
    %v803 = vunpack.c.l.b16 %v221
    %v804 = vunpack.c.h.b16 %v221
    %v805 = vunpack.c.l.b16 %v222
    %v806 = vunpack.c.h.b16 %v222
    %v807 = vpack.c.b16 %v681, %v679
    %v808 = vpack.c.b16 %v682, %v680
    %v809 = vpack.c.b16 %v685, %v683
    %v810 = vpack.c.b16 %v686, %v684
    %v811 = vpack.c.b16 %v689, %v687
    %v812 = vpack.c.b16 %v690, %v688
    %v813 = vpack.c.b16 %v693, %v691
    %v814 = vpack.c.b16 %v694, %v692
    %v815 = vpack.c.b16 %v697, %v695
    %v816 = vpack.c.b16 %v698, %v696
    %v817 = vpack.c.b16 %v701, %v699
    %v818 = vpack.c.b16 %v702, %v700
    %v819 = vpack.c.b16 %v705, %v703
    %v820 = vpack.c.b16 %v706, %v704
    %v821 = vpack.c.b16 %v709, %v707
    %v822 = vpack.c.b16 %v710, %v708
    %v823 = vpack.c.b16 %v713, %v711
    %v824 = vpack.c.b16 %v714, %v712
    %v825 = vpack.c.b16 %v717, %v715
    %v826 = vpack.c.b16 %v718, %v716
    %v827 = vpack.c.b16 %v721, %v719
    %v828 = vpack.c.b16 %v722, %v720
    %v829 = vpack.c.b16 %v725, %v723
    %v830 = vpack.c.b16 %v726, %v724
    %v831 = vpack.c.b16 %v729, %v727
    %v832 = vpack.c.b16 %v730, %v728
    %v833 = vpack.c.b16 %v733, %v731
    %v834 = vpack.c.b16 %v734, %v732
    %v835 = vpack.c.b16 %v737, %v735
    %v836 = vpack.c.b16 %v738, %v736
    %v837 = vpack.c.b16 %v741, %v739
    %v838 = vpack.c.b16 %v742, %v740
    %v839 = vpack.c.b16 %v745, %v743
    %v840 = vpack.c.b16 %v746, %v744
    %v841 = vpack.c.b16 %v749, %v747
    %v842 = vpack.c.b16 %v750, %v748
    %v843 = vpack.c.b16 %v753, %v751
    %v844 = vpack.c.b16 %v754, %v752
    %v845 = vpack.c.b16 %v757, %v755
    %v846 = vpack.c.b16 %v758, %v756
    %v847 = vpack.c.b16 %v761, %v759
    %v848 = vpack.c.b16 %v762, %v760
    %v849 = vpack.c.b16 %v765, %v763
    %v850 = vpack.c.b16 %v766, %v764
    %v851 = vpack.c.b16 %v769, %v767
    %v852 = vpack.c.b16 %v770, %v768
    %v853 = vpack.c.b16 %v773, %v771
    %v854 = vpack.c.b16 %v774, %v772
    %v855 = vpack.c.b16 %v777, %v775
    %v856 = vpack.c.b16 %v778, %v776
    %v857 = vpack.c.b16 %v781, %v779
    %v858 = vpack.c.b16 %v782, %v780
    %v859 = vpack.c.b16 %v785, %v783
    %v860 = vpack.c.b16 %v786, %v784
    %v861 = vpack.c.b16 %v789, %v787
    %v862 = vpack.c.b16 %v790, %v788
    %v863 = vpack.c.b16 %v793, %v791
    %v864 = vpack.c.b16 %v794, %v792
    %v865 = vpack.c.b16 %v797, %v795
    %v866 = vpack.c.b16 %v798, %v796
    %v867 = vpack.c.b16 %v801, %v799
    %v868 = vpack.c.b16 %v802, %v800
    %v869 = vpack.c.b16 %v805, %v803
    %v870 = vpack.c.b16 %v806, %v804
    %935 = vmatprep.subr.bf16.mxu0 %v808
    %936 = vmatpush1.bf16.msra.mxu0 %v807
    %937 = vmatprep.subr.bf16.mxu0 %v810
    %938 = vmatpush1.bf16.msra.mxu0 %v809
    %939 = vmatprep.subr.bf16.mxu0 %v812
    %940 = vmatpush1.bf16.msra.mxu0 %v811
    %941 = vmatprep.subr.bf16.mxu0 %v814
    %942 = vmatpush1.bf16.msra.mxu0 %v813
    %943 = vmatprep.subr.bf16.mxu0 %v816
    %944 = vmatpush1.bf16.msra.mxu0 %v815
    %945 = vmatprep.subr.bf16.mxu0 %v818
    %946 = vmatpush1.bf16.msra.mxu0 %v817
    %947 = vmatprep.subr.bf16.mxu0 %v820
    %948 = vmatpush1.bf16.msra.mxu0 %v819
    %949 = vmatprep.subr.bf16.mxu0 %v822
    %950 = vmatpush1.bf16.msra.mxu0 %v821
    %951 = vmatprep.subr.bf16.mxu0 %v824
    %952 = vmatpush1.bf16.msra.mxu0 %v823
    %953 = vmatprep.subr.bf16.mxu0 %v826
    %954 = vmatpush1.bf16.msra.mxu0 %v825
    %955 = vmatprep.subr.bf16.mxu0 %v828
    %956 = vmatpush1.bf16.msra.mxu0 %v827
    %957 = vmatprep.subr.bf16.mxu0 %v830
    %958 = vmatpush1.bf16.msra.mxu0 %v829
    %959 = vmatprep.subr.bf16.mxu0 %v832
    %960 = vmatpush1.bf16.msra.mxu0 %v831
    %961 = vmatprep.subr.bf16.mxu0 %v834
    %962 = vmatpush1.bf16.msra.mxu0 %v833
    %963 = vmatprep.subr.bf16.mxu0 %v836
    %964 = vmatpush1.bf16.msra.mxu0 %v835
    %965 = vmatprep.subr.bf16.mxu0 %v838
    %966 = vmatpush1.bf16.msra.mxu0 %v837
    %967 = vmatprep.mubr.bf16.mxu0 %v464
    %968 = vmatmul.mubr.bf16.gmra.mrb[0].mxu0 %v463
    %v969 = vpop.f32.mrb[0].mxu0
    %v970 = vadd.f32 %v228, %v969
    %v971 = vpop.f32.mrb[0].mxu0
    %v972 = vadd.f32 %v232, %v971
    %v973 = vpop.f32.mrb[0].mxu0
    %v974 = vadd.f32 %v228, %v973
    %v975 = vpop.f32.mrb[0].mxu0
    %v976 = vadd.f32 %v232, %v975
    %977 = vmatprep.mubr.bf16.mxu0 %v468
    %978 = vmatmul.mubr.bf16.gmra.mrb[0].mxu0 %v467
    %v979 = vpop.f32.mrb[0].mxu0
    %v980 = vadd.f32 %v228, %v979
    %v981 = vpop.f32.mrb[0].mxu0
    %v982 = vadd.f32 %v232, %v981
    %v983 = vpop.f32.mrb[0].mxu0
    %v984 = vadd.f32 %v228, %v983
    %v985 = vpop.f32.mrb[0].mxu0
    %v986 = vadd.f32 %v232, %v985
    %987 = vmatprep.mubr.bf16.mxu0 %v472
    %988 = vmatmul.mubr.bf16.gmra.mrb[0].mxu0 %v471
    %v989 = vpop.f32.mrb[0].mxu0
    %v990 = vadd.f32 %v228, %v989
    %v991 = vpop.f32.mrb[0].mxu0
    %v992 = vadd.f32 %v232, %v991
    %v993 = vpop.f32.mrb[0].mxu0
    %v994 = vadd.f32 %v228, %v993
    %v995 = vpop.f32.mrb[0].mxu0
    %v996 = vadd.f32 %v232, %v995
    %997 = vmatprep.mubr.bf16.mxu0 %v476
    %998 = vmatmul.mubr.bf16.gmra.mrb[0].mxu0 %v475
    %v999 = vpop.f32.mrb[0].mxu0
    %v1000 = vadd.f32 %v228, %v999
    %v1001 = vpop.f32.mrb[0].mxu0
    %v1002 = vadd.f32 %v232, %v1001
    %v1003 = vpop.f32.mrb[0].mxu0
    %v1004 = vadd.f32 %v228, %v1003
    %v1005 = vpop.f32.mrb[0].mxu0
    %v1006 = vadd.f32 %v232, %v1005
    %1007 = vmatprep.mubr.bf16.mxu0 %v480
    %1008 = vmatmul.mubr.bf16.gmra.mrb[0].mxu0 %v479
    %v1009 = vpop.f32.mrb[0].mxu0
    %v1010 = vadd.f32 %v228, %v1009
    %v1011 = vpop.f32.mrb[0].mxu0
    %v1012 = vadd.f32 %v232, %v1011
    %v1013 = vpop.f32.mrb[0].mxu0
    %v1014 = vadd.f32 %v228, %v1013
    %v1015 = vpop.f32.mrb[0].mxu0
    %v1016 = vadd.f32 %v232, %v1015
    %1017 = vmatprep.mubr.bf16.mxu0 %v484
    %1018 = vmatmul.mubr.bf16.gmra.mrb[0].mxu0 %v483
    %v1019 = vpop.f32.mrb[0].mxu0
    %v1020 = vadd.f32 %v228, %v1019
    %v1021 = vpop.f32.mrb[0].mxu0
    %v1022 = vadd.f32 %v232, %v1021
    %v1023 = vpop.f32.mrb[0].mxu0
    %v1024 = vadd.f32 %v228, %v1023
    %v1025 = vpop.f32.mrb[0].mxu0
    %v1026 = vadd.f32 %v232, %v1025
    %1027 = vmatprep.mubr.bf16.mxu0 %v488
    %1028 = vmatmul.mubr.bf16.gmra.mrb[0].mxu0 %v487
    %v1029 = vpop.f32.mrb[0].mxu0
    %v1030 = vadd.f32 %v228, %v1029
    %v1031 = vpop.f32.mrb[0].mxu0
    %v1032 = vadd.f32 %v232, %v1031
    %v1033 = vpop.f32.mrb[0].mxu0
    %v1034 = vadd.f32 %v228, %v1033
    %v1035 = vpop.f32.mrb[0].mxu0
    %v1036 = vadd.f32 %v232, %v1035
    %1037 = vmatprep.mubr.bf16.mxu0 %v492
    %1038 = vmatmul.mubr.bf16.gmra.mrb[0].mxu0 %v491
    %v1039 = vpop.f32.mrb[0].mxu0
    %v1040 = vadd.f32 %v228, %v1039
    %v1041 = vpop.f32.mrb[0].mxu0
    %v1042 = vadd.f32 %v232, %v1041
    %v1043 = vpop.f32.mrb[0].mxu0
    %v1044 = vadd.f32 %v228, %v1043
    %v1045 = vpop.f32.mrb[0].mxu0
    %v1046 = vadd.f32 %v232, %v1045
    %1047 = vmatprep.mubr.bf16.mxu0 %v496
    %1048 = vmatmul.mubr.bf16.gmra.mrb[0].mxu0 %v495
    %v1049 = vpop.f32.mrb[0].mxu0
    %v1050 = vadd.f32 %v228, %v1049
    %v1051 = vpop.f32.mrb[0].mxu0
    %v1052 = vadd.f32 %v232, %v1051
    %v1053 = vpop.f32.mrb[0].mxu0
    %v1054 = vadd.f32 %v228, %v1053
    %v1055 = vpop.f32.mrb[0].mxu0
    %v1056 = vadd.f32 %v232, %v1055
    %1057 = vmatprep.mubr.bf16.mxu0 %v500
    %1058 = vmatmul.mubr.bf16.gmra.mrb[0].mxu0 %v499
    %v1059 = vpop.f32.mrb[0].mxu0
    %v1060 = vadd.f32 %v228, %v1059
    %v1061 = vpop.f32.mrb[0].mxu0
    %v1062 = vadd.f32 %v232, %v1061
    %v1063 = vpop.f32.mrb[0].mxu0
    %v1064 = vadd.f32 %v228, %v1063
    %v1065 = vpop.f32.mrb[0].mxu0
    %v1066 = vadd.f32 %v232, %v1065
    %1067 = vmatprep.mubr.bf16.mxu0 %v504
    %1068 = vmatmul.mubr.bf16.gmra.mrb[0].mxu0 %v503
    %v1069 = vpop.f32.mrb[0].mxu0
    %v1070 = vadd.f32 %v228, %v1069
    %v1071 = vpop.f32.mrb[0].mxu0
    %v1072 = vadd.f32 %v232, %v1071
    %v1073 = vpop.f32.mrb[0].mxu0
    %v1074 = vadd.f32 %v228, %v1073
    %v1075 = vpop.f32.mrb[0].mxu0
    %v1076 = vadd.f32 %v232, %v1075
    %1077 = vmatprep.mubr.bf16.mxu0 %v508
    %1078 = vmatmul.mubr.bf16.gmra.mrb[0].mxu0 %v507
    %v1079 = vpop.f32.mrb[0].mxu0
    %v1080 = vadd.f32 %v228, %v1079
    %v1081 = vpop.f32.mrb[0].mxu0
    %v1082 = vadd.f32 %v232, %v1081
    %v1083 = vpop.f32.mrb[0].mxu0
    %v1084 = vadd.f32 %v228, %v1083
    %v1085 = vpop.f32.mrb[0].mxu0
    %v1086 = vadd.f32 %v232, %v1085
    %1087 = vmatprep.mubr.bf16.mxu0 %v512
    %1088 = vmatmul.mubr.bf16.gmra.mrb[0].mxu0 %v511
    %v1089 = vpop.f32.mrb[0].mxu0
    %v1090 = vadd.f32 %v228, %v1089
    %v1091 = vpop.f32.mrb[0].mxu0
    %v1092 = vadd.f32 %v232, %v1091
    %v1093 = vpop.f32.mrb[0].mxu0
    %v1094 = vadd.f32 %v228, %v1093
    %v1095 = vpop.f32.mrb[0].mxu0
    %v1096 = vadd.f32 %v232, %v1095
    %1097 = vmatprep.mubr.bf16.mxu0 %v516
    %1098 = vmatmul.mubr.bf16.gmra.mrb[0].mxu0 %v515
    %v1099 = vpop.f32.mrb[0].mxu0
    %v1100 = vadd.f32 %v228, %v1099
    %v1101 = vpop.f32.mrb[0].mxu0
    %v1102 = vadd.f32 %v232, %v1101
    %v1103 = vpop.f32.mrb[0].mxu0
    %v1104 = vadd.f32 %v228, %v1103
    %v1105 = vpop.f32.mrb[0].mxu0
    %v1106 = vadd.f32 %v232, %v1105
    %1107 = vmatprep.mubr.bf16.mxu0 %v520
    %1108 = vmatmul.mubr.bf16.gmra.mrb[0].mxu0 %v519
    %v1109 = vpop.f32.mrb[0].mxu0
    %v1110 = vadd.f32 %v228, %v1109
    %v1111 = vpop.f32.mrb[0].mxu0
    %v1112 = vadd.f32 %v232, %v1111
    %v1113 = vpop.f32.mrb[0].mxu0
    %v1114 = vadd.f32 %v228, %v1113
    %v1115 = vpop.f32.mrb[0].mxu0
    %v1116 = vadd.f32 %v232, %v1115
    %1117 = vmatprep.mubr.bf16.mxu0 %v524
    %1118 = vmatmul.mubr.bf16.gmra.mrb[0].mxu0 %v523
    %v1119 = vpop.f32.mrb[0].mxu0
    %v1120 = vadd.f32 %v228, %v1119
    %v1121 = vpop.f32.mrb[0].mxu0
    %v1122 = vadd.f32 %v232, %v1121
    %v1123 = vpop.f32.mrb[0].mxu0
    %v1124 = vadd.f32 %v228, %v1123
    %v1125 = vpop.f32.mrb[0].mxu0
    %v1126 = vadd.f32 %v232, %v1125
    %1127 = vmatprep.mubr.bf16.mxu0 %v528
    %1128 = vmatmul.mubr.bf16.gmra.mrb[0].mxu0 %v527
    %v1129 = vpop.f32.mrb[0].mxu0
    %v1130 = vadd.f32 %v228, %v1129
    %v1131 = vpop.f32.mrb[0].mxu0
    %v1132 = vadd.f32 %v232, %v1131
    %v1133 = vpop.f32.mrb[0].mxu0
    %v1134 = vadd.f32 %v228, %v1133
    %v1135 = vpop.f32.mrb[0].mxu0
    %v1136 = vadd.f32 %v232, %v1135
    %1137 = vmatprep.mubr.bf16.mxu0 %v532
    %1138 = vmatmul.mubr.bf16.gmra.mrb[0].mxu0 %v531
    %v1139 = vpop.f32.mrb[0].mxu0
    %v1140 = vadd.f32 %v228, %v1139
    %v1141 = vpop.f32.mrb[0].mxu0
    %v1142 = vadd.f32 %v232, %v1141
    %v1143 = vpop.f32.mrb[0].mxu0
    %v1144 = vadd.f32 %v228, %v1143
    %v1145 = vpop.f32.mrb[0].mxu0
    %v1146 = vadd.f32 %v232, %v1145
    %1147 = vmatprep.mubr.bf16.mxu0 %v536
    %1148 = vmatmul.mubr.bf16.gmra.mrb[0].mxu0 %v535
    %v1149 = vpop.f32.mrb[0].mxu0
    %v1150 = vadd.f32 %v228, %v1149
    %v1151 = vpop.f32.mrb[0].mxu0
    %v1152 = vadd.f32 %v232, %v1151
    %v1153 = vpop.f32.mrb[0].mxu0
    %v1154 = vadd.f32 %v228, %v1153
    %v1155 = vpop.f32.mrb[0].mxu0
    %v1156 = vadd.f32 %v232, %v1155
    %1157 = vdwg.mxu0
    %1158 = vmatprep.subr.bf16.mxu0 %v840
    %1159 = vmatpush1.bf16.msra.mxu0 %v839
    %1160 = vmatprep.subr.bf16.mxu0 %v842
    %1161 = vmatpush1.bf16.msra.mxu0 %v841
    %1162 = vmatprep.subr.bf16.mxu0 %v844
    %1163 = vmatpush1.bf16.msra.mxu0 %v843
    %1164 = vmatprep.subr.bf16.mxu0 %v846
    %1165 = vmatpush1.bf16.msra.mxu0 %v845
    %1166 = vmatprep.subr.bf16.mxu0 %v848
    %1167 = vmatpush1.bf16.msra.mxu0 %v847
    %1168 = vmatprep.subr.bf16.mxu0 %v850
    %1169 = vmatpush1.bf16.msra.mxu0 %v849
    %1170 = vmatprep.subr.bf16.mxu0 %v852
    %1171 = vmatpush1.bf16.msra.mxu0 %v851
    %1172 = vmatprep.subr.bf16.mxu0 %v854
    %1173 = vmatpush1.bf16.msra.mxu0 %v853
    %1174 = vmatprep.subr.bf16.mxu0 %v856
    %1175 = vmatpush1.bf16.msra.mxu0 %v855
    %1176 = vmatprep.subr.bf16.mxu0 %v858
    %1177 = vmatpush1.bf16.msra.mxu0 %v857
    %1178 = vmatprep.subr.bf16.mxu0 %v860
    %1179 = vmatpush1.bf16.msra.mxu0 %v859
    %1180 = vmatprep.subr.bf16.mxu0 %v862
    %1181 = vmatpush1.bf16.msra.mxu0 %v861
    %1182 = vmatprep.subr.bf16.mxu0 %v864
    %1183 = vmatpush1.bf16.msra.mxu0 %v863
    %1184 = vmatprep.subr.bf16.mxu0 %v866
    %1185 = vmatpush1.bf16.msra.mxu0 %v865
    %1186 = vmatprep.subr.bf16.mxu0 %v868
    %1187 = vmatpush1.bf16.msra.mxu0 %v867
    %1188 = vmatprep.subr.bf16.mxu0 %v870
    %1189 = vmatpush1.bf16.msra.mxu0 %v869
    %1190 = vmatprep.mubr.bf16.mxu0 %v466
    %1191 = vmatmul.mubr.bf16.gmra.mrb[0].mxu0 %v465
    %v1192 = vpop.f32.mrb[0].mxu0
    %v1193 = vadd.f32 %v970, %v1192
    %v1194 = vpop.f32.mrb[0].mxu0
    %v1195 = vadd.f32 %v972, %v1194
    %v1196 = vpop.f32.mrb[0].mxu0
    %v1197 = vadd.f32 %v974, %v1196
    %v1198 = vpop.f32.mrb[0].mxu0
    %v1199 = vadd.f32 %v976, %v1198
    %1200 = vmatprep.mubr.bf16.mxu0 %v470
    %1201 = vmatmul.mubr.bf16.gmra.mrb[0].mxu0 %v469
    %v1202 = vpop.f32.mrb[0].mxu0
    %v1203 = vadd.f32 %v980, %v1202
    %v1204 = vpop.f32.mrb[0].mxu0
    %v1205 = vadd.f32 %v982, %v1204
    %v1206 = vpop.f32.mrb[0].mxu0
    %v1207 = vadd.f32 %v984, %v1206
    %v1208 = vpop.f32.mrb[0].mxu0
    %v1209 = vadd.f32 %v986, %v1208
    %1210 = vmatprep.mubr.bf16.mxu0 %v474
    %1211 = vmatmul.mubr.bf16.gmra.mrb[0].mxu0 %v473
    %v1212 = vpop.f32.mrb[0].mxu0
    %v1213 = vadd.f32 %v990, %v1212
    %v1214 = vpop.f32.mrb[0].mxu0
    %v1215 = vadd.f32 %v992, %v1214
    %v1216 = vpop.f32.mrb[0].mxu0
    %v1217 = vadd.f32 %v994, %v1216
    %v1218 = vpop.f32.mrb[0].mxu0
    %v1219 = vadd.f32 %v996, %v1218
    %1220 = vmatprep.mubr.bf16.mxu0 %v478
    %1221 = vmatmul.mubr.bf16.gmra.mrb[0].mxu0 %v477
    %v1222 = vpop.f32.mrb[0].mxu0
    %v1223 = vadd.f32 %v1000, %v1222
    %v1224 = vpop.f32.mrb[0].mxu0
    %v1225 = vadd.f32 %v1002, %v1224
    %v1226 = vpop.f32.mrb[0].mxu0
    %v1227 = vadd.f32 %v1004, %v1226
    %v1228 = vpop.f32.mrb[0].mxu0
    %v1229 = vadd.f32 %v1006, %v1228
    %1230 = vmatprep.mubr.bf16.mxu0 %v482
    %1231 = vmatmul.mubr.bf16.gmra.mrb[0].mxu0 %v481
    %v1232 = vpop.f32.mrb[0].mxu0
    %v1233 = vadd.f32 %v1010, %v1232
    %v1234 = vpop.f32.mrb[0].mxu0
    %v1235 = vadd.f32 %v1012, %v1234
    %v1236 = vpop.f32.mrb[0].mxu0
    %v1237 = vadd.f32 %v1014, %v1236
    %v1238 = vpop.f32.mrb[0].mxu0
    %v1239 = vadd.f32 %v1016, %v1238
    %1240 = vmatprep.mubr.bf16.mxu0 %v486
    %1241 = vmatmul.mubr.bf16.gmra.mrb[0].mxu0 %v485
    %v1242 = vpop.f32.mrb[0].mxu0
    %v1243 = vadd.f32 %v1020, %v1242
    %v1244 = vpop.f32.mrb[0].mxu0
    %v1245 = vadd.f32 %v1022, %v1244
    %v1246 = vpop.f32.mrb[0].mxu0
    %v1247 = vadd.f32 %v1024, %v1246
    %v1248 = vpop.f32.mrb[0].mxu0
    %v1249 = vadd.f32 %v1026, %v1248
    %1250 = vmatprep.mubr.bf16.mxu0 %v490
    %1251 = vmatmul.mubr.bf16.gmra.mrb[0].mxu0 %v489
    %v1252 = vpop.f32.mrb[0].mxu0
    %v1253 = vadd.f32 %v1030, %v1252
    %v1254 = vpop.f32.mrb[0].mxu0
    %v1255 = vadd.f32 %v1032, %v1254
    %v1256 = vpop.f32.mrb[0].mxu0
    %v1257 = vadd.f32 %v1034, %v1256
    %v1258 = vpop.f32.mrb[0].mxu0
    %v1259 = vadd.f32 %v1036, %v1258
    %1260 = vmatprep.mubr.bf16.mxu0 %v494
    %1261 = vmatmul.mubr.bf16.gmra.mrb[0].mxu0 %v493
    %v1262 = vpop.f32.mrb[0].mxu0
    %v1263 = vadd.f32 %v1040, %v1262
    %v1264 = vpop.f32.mrb[0].mxu0
    %v1265 = vadd.f32 %v1042, %v1264
    %v1266 = vpop.f32.mrb[0].mxu0
    %v1267 = vadd.f32 %v1044, %v1266
    %v1268 = vpop.f32.mrb[0].mxu0
    %v1269 = vadd.f32 %v1046, %v1268
    %1270 = vmatprep.mubr.bf16.mxu0 %v498
    %1271 = vmatmul.mubr.bf16.gmra.mrb[0].mxu0 %v497
    %v1272 = vpop.f32.mrb[0].mxu0
    %v1273 = vadd.f32 %v1050, %v1272
    %v1274 = vpop.f32.mrb[0].mxu0
    %v1275 = vadd.f32 %v1052, %v1274
    %v1276 = vpop.f32.mrb[0].mxu0
    %v1277 = vadd.f32 %v1054, %v1276
    %v1278 = vpop.f32.mrb[0].mxu0
    %v1279 = vadd.f32 %v1056, %v1278
    %1280 = vmatprep.mubr.bf16.mxu0 %v502
    %1281 = vmatmul.mubr.bf16.gmra.mrb[0].mxu0 %v501
    %v1282 = vpop.f32.mrb[0].mxu0
    %v1283 = vadd.f32 %v1060, %v1282
    %v1284 = vpop.f32.mrb[0].mxu0
    %v1285 = vadd.f32 %v1062, %v1284
    %v1286 = vpop.f32.mrb[0].mxu0
    %v1287 = vadd.f32 %v1064, %v1286
    %v1288 = vpop.f32.mrb[0].mxu0
    %v1289 = vadd.f32 %v1066, %v1288
    %1290 = vmatprep.mubr.bf16.mxu0 %v506
    %1291 = vmatmul.mubr.bf16.gmra.mrb[0].mxu0 %v505
    %v1292 = vpop.f32.mrb[0].mxu0
    %v1293 = vadd.f32 %v1070, %v1292
    %v1294 = vpop.f32.mrb[0].mxu0
    %v1295 = vadd.f32 %v1072, %v1294
    %v1296 = vpop.f32.mrb[0].mxu0
    %v1297 = vadd.f32 %v1074, %v1296
    %v1298 = vpop.f32.mrb[0].mxu0
    %v1299 = vadd.f32 %v1076, %v1298
    %1300 = vmatprep.mubr.bf16.mxu0 %v510
    %1301 = vmatmul.mubr.bf16.gmra.mrb[0].mxu0 %v509
    %v1302 = vpop.f32.mrb[0].mxu0
    %v1303 = vadd.f32 %v1080, %v1302
    %v1304 = vpop.f32.mrb[0].mxu0
    %v1305 = vadd.f32 %v1082, %v1304
    %v1306 = vpop.f32.mrb[0].mxu0
    %v1307 = vadd.f32 %v1084, %v1306
    %v1308 = vpop.f32.mrb[0].mxu0
    %v1309 = vadd.f32 %v1086, %v1308
    %1310 = vmatprep.mubr.bf16.mxu0 %v514
    %1311 = vmatmul.mubr.bf16.gmra.mrb[0].mxu0 %v513
    %v1312 = vpop.f32.mrb[0].mxu0
    %v1313 = vadd.f32 %v1090, %v1312
    %v1314 = vpop.f32.mrb[0].mxu0
    %v1315 = vadd.f32 %v1092, %v1314
    %v1316 = vpop.f32.mrb[0].mxu0
    %v1317 = vadd.f32 %v1094, %v1316
    %v1318 = vpop.f32.mrb[0].mxu0
    %v1319 = vadd.f32 %v1096, %v1318
    %1320 = vmatprep.mubr.bf16.mxu0 %v518
    %1321 = vmatmul.mubr.bf16.gmra.mrb[0].mxu0 %v517
    %v1322 = vpop.f32.mrb[0].mxu0
    %v1323 = vadd.f32 %v1100, %v1322
    %v1324 = vpop.f32.mrb[0].mxu0
    %v1325 = vadd.f32 %v1102, %v1324
    %v1326 = vpop.f32.mrb[0].mxu0
    %v1327 = vadd.f32 %v1104, %v1326
    %v1328 = vpop.f32.mrb[0].mxu0
    %v1329 = vadd.f32 %v1106, %v1328
    %1330 = vmatprep.mubr.bf16.mxu0 %v522
    %1331 = vmatmul.mubr.bf16.gmra.mrb[0].mxu0 %v521
    %v1332 = vpop.f32.mrb[0].mxu0
    %v1333 = vadd.f32 %v1110, %v1332
    %v1334 = vpop.f32.mrb[0].mxu0
    %v1335 = vadd.f32 %v1112, %v1334
    %v1336 = vpop.f32.mrb[0].mxu0
    %v1337 = vadd.f32 %v1114, %v1336
    %v1338 = vpop.f32.mrb[0].mxu0
    %v1339 = vadd.f32 %v1116, %v1338
    %1340 = vmatprep.mubr.bf16.mxu0 %v526
    %1341 = vmatmul.mubr.bf16.gmra.mrb[0].mxu0 %v525
    %v1342 = vpop.f32.mrb[0].mxu0
    %v1343 = vadd.f32 %v1120, %v1342
    %v1344 = vpop.f32.mrb[0].mxu0
    %v1345 = vadd.f32 %v1122, %v1344
    %v1346 = vpop.f32.mrb[0].mxu0
    %v1347 = vadd.f32 %v1124, %v1346
    %v1348 = vpop.f32.mrb[0].mxu0
    %v1349 = vadd.f32 %v1126, %v1348
    %1350 = vmatprep.mubr.bf16.mxu0 %v530
    %1351 = vmatmul.mubr.bf16.gmra.mrb[0].mxu0 %v529
    %v1352 = vpop.f32.mrb[0].mxu0
    %v1353 = vadd.f32 %v1130, %v1352
    %v1354 = vpop.f32.mrb[0].mxu0
    %v1355 = vadd.f32 %v1132, %v1354
    %v1356 = vpop.f32.mrb[0].mxu0
    %v1357 = vadd.f32 %v1134, %v1356
    %v1358 = vpop.f32.mrb[0].mxu0
    %v1359 = vadd.f32 %v1136, %v1358
    %1360 = vmatprep.mubr.bf16.mxu0 %v534
    %1361 = vmatmul.mubr.bf16.gmra.mrb[0].mxu0 %v533
    %v1362 = vpop.f32.mrb[0].mxu0
    %v1363 = vadd.f32 %v1140, %v1362
    %v1364 = vpop.f32.mrb[0].mxu0
    %v1365 = vadd.f32 %v1142, %v1364
    %v1366 = vpop.f32.mrb[0].mxu0
    %v1367 = vadd.f32 %v1144, %v1366
    %v1368 = vpop.f32.mrb[0].mxu0
    %v1369 = vadd.f32 %v1146, %v1368
    %1370 = vmatprep.mubr.bf16.mxu0 %v538
    %1371 = vmatmul.mubr.bf16.gmra.mrb[0].mxu0 %v537
    %v1372 = vpop.f32.mrb[0].mxu0
    %v1373 = vadd.f32 %v1150, %v1372
    %v1374 = vpop.f32.mrb[0].mxu0
    %v1375 = vadd.f32 %v1152, %v1374
    %v1376 = vpop.f32.mrb[0].mxu0
    %v1377 = vadd.f32 %v1154, %v1376
    %v1378 = vpop.f32.mrb[0].mxu0
    %v1379 = vadd.f32 %v1156, %v1378
    %1380 = vdwg.mxu0
    %v1381 = vtanh.pop %v1193
    %v1382 = vtanh.pop %v1197
    %v1383 = vtanh.pop %v1203
    %v1384 = vtanh.pop %v1207
    %v1385 = vtanh.pop %v1213
    %v1386 = vtanh.pop %v1217
    %v1387 = vtanh.pop %v1223
    %v1388 = vtanh.pop %v1227
    %v1389 = vtanh.pop %v1233
    %v1390 = vtanh.pop %v1237
    %v1391 = vtanh.pop %v1243
    %v1392 = vtanh.pop %v1247
    %v1393 = vtanh.pop %v1253
    %v1394 = vtanh.pop %v1257
    %v1395 = vtanh.pop %v1263
    %v1396 = vtanh.pop %v1267
    %v1397 = vtanh.pop %v1273
    %v1398 = vtanh.pop %v1277
    %v1399 = vtanh.pop %v1283
    %v1400 = vtanh.pop %v1287
    %v1401 = vtanh.pop %v1293
    %v1402 = vtanh.pop %v1297
    %v1403 = vtanh.pop %v1303
    %v1404 = vtanh.pop %v1307
    %v1405 = vtanh.pop %v1313
    %v1406 = vtanh.pop %v1317
    %v1407 = vtanh.pop %v1323
    %v1408 = vtanh.pop %v1327
    %v1409 = vtanh.pop %v1333
    %v1410 = vtanh.pop %v1337
    %v1411 = vtanh.pop %v1343
    %v1412 = vtanh.pop %v1347
    %v1413 = vtanh.pop %v1353
    %v1414 = vtanh.pop %v1357
    %v1415 = vtanh.pop %v1363
    %v1416 = vtanh.pop %v1367
    %v1417 = vtanh.pop %v1373
    %v1418 = vtanh.pop %v1377
    %v1419 = vxor.u32 %v1195, 2147483648
    %v1420 = vxor.u32 %v1199, 2147483648
    %v1421 = vxor.u32 %v1205, 2147483648
    %v1422 = vxor.u32 %v1209, 2147483648
    %v1423 = vxor.u32 %v1215, 2147483648
    %v1424 = vxor.u32 %v1219, 2147483648
    %v1425 = vxor.u32 %v1225, 2147483648
    %v1426 = vxor.u32 %v1229, 2147483648
    %v1427 = vxor.u32 %v1235, 2147483648
    %v1428 = vxor.u32 %v1239, 2147483648
    %v1429 = vxor.u32 %v1245, 2147483648
    %v1430 = vxor.u32 %v1249, 2147483648
    %v1431 = vxor.u32 %v1255, 2147483648
    %v1432 = vxor.u32 %v1259, 2147483648
    %v1433 = vxor.u32 %v1265, 2147483648
    %v1434 = vxor.u32 %v1269, 2147483648
    %v1435 = vxor.u32 %v1275, 2147483648
    %v1436 = vxor.u32 %v1279, 2147483648
    %v1437 = vxor.u32 %v1285, 2147483648
    %v1438 = vxor.u32 %v1289, 2147483648
    %v1439 = vxor.u32 %v1295, 2147483648
    %v1440 = vxor.u32 %v1299, 2147483648
    %v1441 = vxor.u32 %v1305, 2147483648
    %v1442 = vxor.u32 %v1309, 2147483648
    %v1443 = vxor.u32 %v1315, 2147483648
    %v1444 = vxor.u32 %v1319, 2147483648
    %v1445 = vxor.u32 %v1325, 2147483648
    %v1446 = vxor.u32 %v1329, 2147483648
    %v1447 = vxor.u32 %v1335, 2147483648
    %v1448 = vxor.u32 %v1339, 2147483648
    %v1449 = vxor.u32 %v1345, 2147483648
    %v1450 = vxor.u32 %v1349, 2147483648
    %v1451 = vxor.u32 %v1355, 2147483648
    %v1452 = vxor.u32 %v1359, 2147483648
    %v1453 = vxor.u32 %v1365, 2147483648
    %v1454 = vxor.u32 %v1369, 2147483648
    %v1455 = vxor.u32 %v1375, 2147483648
    %v1456 = vxor.u32 %v1379, 2147483648
    %v1457 = vmul.f32 %v1419, 1.442695
    %v1458 = vpow.pop %v1457
    %v1459 = vmul.f32 %v1420, 1.442695
    %v1460 = vpow.pop %v1459
    %v1461 = vmul.f32 %v1421, 1.442695
    %v1462 = vpow.pop %v1461
    %v1463 = vmul.f32 %v1422, 1.442695
    %v1464 = vpow.pop %v1463
    %v1465 = vmul.f32 %v1423, 1.442695
    %v1466 = vpow.pop %v1465
    %v1467 = vmul.f32 %v1424, 1.442695
    %v1468 = vpow.pop %v1467
    %v1469 = vmul.f32 %v1425, 1.442695
    %v1470 = vpow.pop %v1469
    %v1471 = vmul.f32 %v1426, 1.442695
    %v1472 = vpow.pop %v1471
    %v1473 = vmul.f32 %v1427, 1.442695
    %v1474 = vpow.pop %v1473
    %v1475 = vmul.f32 %v1428, 1.442695
    %v1476 = vpow.pop %v1475
    %v1477 = vmul.f32 %v1429, 1.442695
    %v1478 = vpow.pop %v1477
    %v1479 = vmul.f32 %v1430, 1.442695
    %v1480 = vpow.pop %v1479
    %v1481 = vmul.f32 %v1431, 1.442695
    %v1482 = vpow.pop %v1481
    %v1483 = vmul.f32 %v1432, 1.442695
    %v1484 = vpow.pop %v1483
    %v1485 = vmul.f32 %v1433, 1.442695
    %v1486 = vpow.pop %v1485
    %v1487 = vmul.f32 %v1434, 1.442695
    %v1488 = vpow.pop %v1487
    %v1489 = vmul.f32 %v1435, 1.442695
    %v1490 = vpow.pop %v1489
    %v1491 = vmul.f32 %v1436, 1.442695
    %v1492 = vpow.pop %v1491
    %v1493 = vmul.f32 %v1437, 1.442695
    %v1494 = vpow.pop %v1493
    %v1495 = vmul.f32 %v1438, 1.442695
    %v1496 = vpow.pop %v1495
    %v1497 = vmul.f32 %v1439, 1.442695
    %v1498 = vpow.pop %v1497
    %v1499 = vmul.f32 %v1440, 1.442695
    %v1500 = vpow.pop %v1499
    %v1501 = vmul.f32 %v1441, 1.442695
    %v1502 = vpow.pop %v1501
    %v1503 = vmul.f32 %v1442, 1.442695
    %v1504 = vpow.pop %v1503
    %v1505 = vmul.f32 %v1443, 1.442695
    %v1506 = vpow.pop %v1505
    %v1507 = vmul.f32 %v1444, 1.442695
    %v1508 = vpow.pop %v1507
    %v1509 = vmul.f32 %v1445, 1.442695
    %v1510 = vpow.pop %v1509
    %v1511 = vmul.f32 %v1446, 1.442695
    %v1512 = vpow.pop %v1511
    %v1513 = vmul.f32 %v1447, 1.442695
    %v1514 = vpow.pop %v1513
    %v1515 = vmul.f32 %v1448, 1.442695
    %v1516 = vpow.pop %v1515
    %v1517 = vmul.f32 %v1449, 1.442695
    %v1518 = vpow.pop %v1517
    %v1519 = vmul.f32 %v1450, 1.442695
    %v1520 = vpow.pop %v1519
    %v1521 = vmul.f32 %v1451, 1.442695
    %v1522 = vpow.pop %v1521
    %v1523 = vmul.f32 %v1452, 1.442695
    %v1524 = vpow.pop %v1523
    %v1525 = vmul.f32 %v1453, 1.442695
    %v1526 = vpow.pop %v1525
    %v1527 = vmul.f32 %v1454, 1.442695
    %v1528 = vpow.pop %v1527
    %v1529 = vmul.f32 %v1455, 1.442695
    %v1530 = vpow.pop %v1529
    %v1531 = vmul.f32 %v1456, 1.442695
    %v1532 = vpow.pop %v1531
    %v1533 = vadd.f32 %v1458, 1.0
    %v1534 = vadd.f32 %v1460, 1.0
    %v1535 = vadd.f32 %v1462, 1.0
    %v1536 = vadd.f32 %v1464, 1.0
    %v1537 = vadd.f32 %v1466, 1.0
    %v1538 = vadd.f32 %v1468, 1.0
    %v1539 = vadd.f32 %v1470, 1.0
    %v1540 = vadd.f32 %v1472, 1.0
    %v1541 = vadd.f32 %v1474, 1.0
    %v1542 = vadd.f32 %v1476, 1.0
    %v1543 = vadd.f32 %v1478, 1.0
    %v1544 = vadd.f32 %v1480, 1.0
    %v1545 = vadd.f32 %v1482, 1.0
    %v1546 = vadd.f32 %v1484, 1.0
    %v1547 = vadd.f32 %v1486, 1.0
    %v1548 = vadd.f32 %v1488, 1.0
    %v1549 = vadd.f32 %v1490, 1.0
    %v1550 = vadd.f32 %v1492, 1.0
    %v1551 = vadd.f32 %v1494, 1.0
    %v1552 = vadd.f32 %v1496, 1.0
    %v1553 = vadd.f32 %v1498, 1.0
    %v1554 = vadd.f32 %v1500, 1.0
    %v1555 = vadd.f32 %v1502, 1.0
    %v1556 = vadd.f32 %v1504, 1.0
    %v1557 = vadd.f32 %v1506, 1.0
    %v1558 = vadd.f32 %v1508, 1.0
    %v1559 = vadd.f32 %v1510, 1.0
    %v1560 = vadd.f32 %v1512, 1.0
    %v1561 = vadd.f32 %v1514, 1.0
    %v1562 = vadd.f32 %v1516, 1.0
    %v1563 = vadd.f32 %v1518, 1.0
    %v1564 = vadd.f32 %v1520, 1.0
    %v1565 = vadd.f32 %v1522, 1.0
    %v1566 = vadd.f32 %v1524, 1.0
    %v1567 = vadd.f32 %v1526, 1.0
    %v1568 = vadd.f32 %v1528, 1.0
    %v1569 = vadd.f32 %v1530, 1.0
    %v1570 = vadd.f32 %v1532, 1.0
    %v1571 = vrcp.pop %v1533
    %v1572 = vmul.f32 1.0, %v1571
    %v1573 = vrcp.pop %v1534
    %v1574 = vmul.f32 1.0, %v1573
    %v1575 = vrcp.pop %v1535
    %v1576 = vmul.f32 1.0, %v1575
    %v1577 = vrcp.pop %v1536
    %v1578 = vmul.f32 1.0, %v1577
    %v1579 = vrcp.pop %v1537
    %v1580 = vmul.f32 1.0, %v1579
    %v1581 = vrcp.pop %v1538
    %v1582 = vmul.f32 1.0, %v1581
    %v1583 = vrcp.pop %v1539
    %v1584 = vmul.f32 1.0, %v1583
    %v1585 = vrcp.pop %v1540
    %v1586 = vmul.f32 1.0, %v1585
    %v1587 = vrcp.pop %v1541
    %v1588 = vmul.f32 1.0, %v1587
    %v1589 = vrcp.pop %v1542
    %v1590 = vmul.f32 1.0, %v1589
    %v1591 = vrcp.pop %v1543
    %v1592 = vmul.f32 1.0, %v1591
    %v1593 = vrcp.pop %v1544
    %v1594 = vmul.f32 1.0, %v1593
    %v1595 = vrcp.pop %v1545
    %v1596 = vmul.f32 1.0, %v1595
    %v1597 = vrcp.pop %v1546
    %v1598 = vmul.f32 1.0, %v1597
    %v1599 = vrcp.pop %v1547
    %v1600 = vmul.f32 1.0, %v1599
    %v1601 = vrcp.pop %v1548
    %v1602 = vmul.f32 1.0, %v1601
    %v1603 = vrcp.pop %v1549
    %v1604 = vmul.f32 1.0, %v1603
    %v1605 = vrcp.pop %v1550
    %v1606 = vmul.f32 1.0, %v1605
    %v1607 = vrcp.pop %v1551
    %v1608 = vmul.f32 1.0, %v1607
    %v1609 = vrcp.pop %v1552
    %v1610 = vmul.f32 1.0, %v1609
    %v1611 = vrcp.pop %v1553
    %v1612 = vmul.f32 1.0, %v1611
    %v1613 = vrcp.pop %v1554
    %v1614 = vmul.f32 1.0, %v1613
    %v1615 = vrcp.pop %v1555
    %v1616 = vmul.f32 1.0, %v1615
    %v1617 = vrcp.pop %v1556
    %v1618 = vmul.f32 1.0, %v1617
    %v1619 = vrcp.pop %v1557
    %v1620 = vmul.f32 1.0, %v1619
    %v1621 = vrcp.pop %v1558
    %v1622 = vmul.f32 1.0, %v1621
    %v1623 = vrcp.pop %v1559
    %v1624 = vmul.f32 1.0, %v1623
    %v1625 = vrcp.pop %v1560
    %v1626 = vmul.f32 1.0, %v1625
    %v1627 = vrcp.pop %v1561
    %v1628 = vmul.f32 1.0, %v1627
    %v1629 = vrcp.pop %v1562
    %v1630 = vmul.f32 1.0, %v1629
    %v1631 = vrcp.pop %v1563
    %v1632 = vmul.f32 1.0, %v1631
    %v1633 = vrcp.pop %v1564
    %v1634 = vmul.f32 1.0, %v1633
    %v1635 = vrcp.pop %v1565
    %v1636 = vmul.f32 1.0, %v1635
    %v1637 = vrcp.pop %v1566
    %v1638 = vmul.f32 1.0, %v1637
    %v1639 = vrcp.pop %v1567
    %v1640 = vmul.f32 1.0, %v1639
    %v1641 = vrcp.pop %v1568
    %v1642 = vmul.f32 1.0, %v1641
    %v1643 = vrcp.pop %v1569
    %v1644 = vmul.f32 1.0, %v1643
    %v1645 = vrcp.pop %v1570
    %v1646 = vmul.f32 1.0, %v1645
    %v1647 = vmul.f32 %v1381, %v1572
    %v1648 = vmul.f32 %v1382, %v1574
    %v1649 = vmul.f32 %v1383, %v1576
    %v1650 = vmul.f32 %v1384, %v1578
    %v1651 = vmul.f32 %v1385, %v1580
    %v1652 = vmul.f32 %v1386, %v1582
    %v1653 = vmul.f32 %v1387, %v1584
    %v1654 = vmul.f32 %v1388, %v1586
    %v1655 = vmul.f32 %v1389, %v1588
    %v1656 = vmul.f32 %v1390, %v1590
    %v1657 = vmul.f32 %v1391, %v1592
    %v1658 = vmul.f32 %v1392, %v1594
    %v1659 = vmul.f32 %v1393, %v1596
    %v1660 = vmul.f32 %v1394, %v1598
    %v1661 = vmul.f32 %v1395, %v1600
    %v1662 = vmul.f32 %v1396, %v1602
    %v1663 = vmul.f32 %v1397, %v1604
    %v1664 = vmul.f32 %v1398, %v1606
    %v1665 = vmul.f32 %v1399, %v1608
    %v1666 = vmul.f32 %v1400, %v1610
    %v1667 = vmul.f32 %v1401, %v1612
    %v1668 = vmul.f32 %v1402, %v1614
    %v1669 = vmul.f32 %v1403, %v1616
    %v1670 = vmul.f32 %v1404, %v1618
    %v1671 = vmul.f32 %v1405, %v1620
    %v1672 = vmul.f32 %v1406, %v1622
    %v1673 = vmul.f32 %v1407, %v1624
    %v1674 = vmul.f32 %v1408, %v1626
    %v1675 = vmul.f32 %v1409, %v1628
    %v1676 = vmul.f32 %v1410, %v1630
    %v1677 = vmul.f32 %v1411, %v1632
    %v1678 = vmul.f32 %v1412, %v1634
    %v1679 = vmul.f32 %v1413, %v1636
    %v1680 = vmul.f32 %v1414, %v1638
    %v1681 = vmul.f32 %v1415, %v1640
    %v1682 = vmul.f32 %v1416, %v1642
    %v1683 = vmul.f32 %v1417, %v1644
    %v1684 = vmul.f32 %v1418, %v1646
    %v1685 = vld [vmem:[%s3] sm:$0x1]
    %v1687 = vlaneseq
    %v1688 = vshrl.u32 %v1687, 7
    %v1689 = vsub.s32 0, %v1688
    %v1690 = vrot.slane %v1685, %v1689
    %v1692 = vmul.f32 %v1647, %v1690
    %v1693 = vmul.f32 %v1648, %v1690
    %v1694 = vmul.f32 %v1649, %v1690
    %v1695 = vmul.f32 %v1650, %v1690
    %v1696 = vmul.f32 %v1651, %v1690
    %v1697 = vmul.f32 %v1652, %v1690
    %v1698 = vmul.f32 %v1653, %v1690
    %v1699 = vmul.f32 %v1654, %v1690
    %v1700 = vmul.f32 %v1655, %v1690
    %v1701 = vmul.f32 %v1656, %v1690
    %v1702 = vmul.f32 %v1657, %v1690
    %v1703 = vmul.f32 %v1658, %v1690
    %v1704 = vmul.f32 %v1659, %v1690
    %v1705 = vmul.f32 %v1660, %v1690
    %v1706 = vmul.f32 %v1661, %v1690
    %v1707 = vmul.f32 %v1662, %v1690
    %v1708 = vmul.f32 %v1663, %v1690
    %v1709 = vmul.f32 %v1664, %v1690
    %v1710 = vmul.f32 %v1665, %v1690
    %v1711 = vmul.f32 %v1666, %v1690
    %v1712 = vmul.f32 %v1667, %v1690
    %v1713 = vmul.f32 %v1668, %v1690
    %v1714 = vmul.f32 %v1669, %v1690
    %v1715 = vmul.f32 %v1670, %v1690
    %v1716 = vmul.f32 %v1671, %v1690
    %v1717 = vmul.f32 %v1672, %v1690
    %v1718 = vmul.f32 %v1673, %v1690
    %v1719 = vmul.f32 %v1674, %v1690
    %v1720 = vmul.f32 %v1675, %v1690
    %v1721 = vmul.f32 %v1676, %v1690
    %v1722 = vmul.f32 %v1677, %v1690
    %v1723 = vmul.f32 %v1678, %v1690
    %v1724 = vmul.f32 %v1679, %v1690
    %v1725 = vmul.f32 %v1680, %v1690
    %v1726 = vmul.f32 %v1681, %v1690
    %v1727 = vmul.f32 %v1682, %v1690
    %v1728 = vmul.f32 %v1683, %v1690
    %v1729 = vmul.f32 %v1684, %v1690
    %1730 = vadd.xlane.f32.xlu0 %v1692
    %v1731 = vpop.xlane.xlu0 %1730
    %1732 = vadd.xlane.f32.xlu0 %v1693
    %v1733 = vpop.xlane.xlu0 %1732
    %1734 = vadd.xlane.f32.xlu0 %v1694
    %v1735 = vpop.xlane.xlu0 %1734
    %1736 = vadd.xlane.f32.xlu0 %v1695
    %v1737 = vpop.xlane.xlu0 %1736
    %1738 = vadd.xlane.f32.xlu0 %v1696
    %v1739 = vpop.xlane.xlu0 %1738
    %1740 = vadd.xlane.f32.xlu0 %v1697
    %v1741 = vpop.xlane.xlu0 %1740
    %1742 = vadd.xlane.f32.xlu0 %v1698
    %v1743 = vpop.xlane.xlu0 %1742
    %1744 = vadd.xlane.f32.xlu0 %v1699
    %v1745 = vpop.xlane.xlu0 %1744
    %1746 = vadd.xlane.f32.xlu0 %v1700
    %v1747 = vpop.xlane.xlu0 %1746
    %1748 = vadd.xlane.f32.xlu0 %v1701
    %v1749 = vpop.xlane.xlu0 %1748
    %1750 = vadd.xlane.f32.xlu0 %v1702
    %v1751 = vpop.xlane.xlu0 %1750
    %1752 = vadd.xlane.f32.xlu0 %v1703
    %v1753 = vpop.xlane.xlu0 %1752
    %1754 = vadd.xlane.f32.xlu0 %v1704
    %v1755 = vpop.xlane.xlu0 %1754
    %1756 = vadd.xlane.f32.xlu0 %v1705
    %v1757 = vpop.xlane.xlu0 %1756
    %1758 = vadd.xlane.f32.xlu0 %v1706
    %v1759 = vpop.xlane.xlu0 %1758
    %1760 = vadd.xlane.f32.xlu0 %v1707
    %v1761 = vpop.xlane.xlu0 %1760
    %1762 = vadd.xlane.f32.xlu0 %v1708
    %v1763 = vpop.xlane.xlu0 %1762
    %1764 = vadd.xlane.f32.xlu0 %v1709
    %v1765 = vpop.xlane.xlu0 %1764
    %1766 = vadd.xlane.f32.xlu0 %v1710
    %v1767 = vpop.xlane.xlu0 %1766
    %1768 = vadd.xlane.f32.xlu0 %v1711
    %v1769 = vpop.xlane.xlu0 %1768
    %1770 = vadd.xlane.f32.xlu0 %v1712
    %v1771 = vpop.xlane.xlu0 %1770
    %1772 = vadd.xlane.f32.xlu0 %v1713
    %v1773 = vpop.xlane.xlu0 %1772
    %1774 = vadd.xlane.f32.xlu0 %v1714
    %v1775 = vpop.xlane.xlu0 %1774
    %1776 = vadd.xlane.f32.xlu0 %v1715
    %v1777 = vpop.xlane.xlu0 %1776
    %1778 = vadd.xlane.f32.xlu0 %v1716
    %v1779 = vpop.xlane.xlu0 %1778
    %1780 = vadd.xlane.f32.xlu0 %v1717
    %v1781 = vpop.xlane.xlu0 %1780
    %1782 = vadd.xlane.f32.xlu0 %v1718
    %v1783 = vpop.xlane.xlu0 %1782
    %1784 = vadd.xlane.f32.xlu0 %v1719
    %v1785 = vpop.xlane.xlu0 %1784
    %1786 = vadd.xlane.f32.xlu0 %v1720
    %v1787 = vpop.xlane.xlu0 %1786
    %1788 = vadd.xlane.f32.xlu0 %v1721
    %v1789 = vpop.xlane.xlu0 %1788
    %1790 = vadd.xlane.f32.xlu0 %v1722
    %v1791 = vpop.xlane.xlu0 %1790
    %1792 = vadd.xlane.f32.xlu0 %v1723
    %v1793 = vpop.xlane.xlu0 %1792
    %1794 = vadd.xlane.f32.xlu0 %v1724
    %v1795 = vpop.xlane.xlu0 %1794
    %1796 = vadd.xlane.f32.xlu0 %v1725
    %v1797 = vpop.xlane.xlu0 %1796
    %1798 = vadd.xlane.f32.xlu0 %v1726
    %v1799 = vpop.xlane.xlu0 %1798
    %1800 = vadd.xlane.f32.xlu0 %v1727
    %v1801 = vpop.xlane.xlu0 %1800
    %1802 = vadd.xlane.f32.xlu0 %v1728
    %v1803 = vpop.xlane.xlu0 %1802
    %vm1804 = vcmask 1043456
    %v1805 = vsel %vm1804, %v1729, 0.0
    %1806 = vadd.xlane.f32.xlu0 %v1805
    %v1807 = vpop.xlane.xlu0 %1806
    %v1808 = vld [vmem:[#allocation5] sm:$0x1]
    %v1810 = vlaneseq
    %v1811 = vshrl.u32 %v1810, 7
    %v1812 = vsub.s32 0, %v1811
    %v1813 = vrot.slane %v1808, %v1812
    %v1815 = vadd.f32 %v1731, %v1813
    %v1816 = vadd.f32 %v1733, %v1813
    %v1817 = vadd.f32 %v1735, %v1813
    %v1818 = vadd.f32 %v1737, %v1813
    %v1819 = vadd.f32 %v1739, %v1813
    %v1820 = vadd.f32 %v1741, %v1813
    %v1821 = vadd.f32 %v1743, %v1813
    %v1822 = vadd.f32 %v1745, %v1813
    %v1823 = vadd.f32 %v1747, %v1813
    %v1824 = vadd.f32 %v1749, %v1813
    %v1825 = vadd.f32 %v1751, %v1813
    %v1826 = vadd.f32 %v1753, %v1813
    %v1827 = vadd.f32 %v1755, %v1813
    %v1828 = vadd.f32 %v1757, %v1813
    %v1829 = vadd.f32 %v1759, %v1813
    %v1830 = vadd.f32 %v1761, %v1813
    %v1831 = vadd.f32 %v1763, %v1813
    %v1832 = vadd.f32 %v1765, %v1813
    %v1833 = vadd.f32 %v1767, %v1813
    %v1834 = vadd.f32 %v1769, %v1813
    %v1835 = vadd.f32 %v1771, %v1813
    %v1836 = vadd.f32 %v1773, %v1813
    %v1837 = vadd.f32 %v1775, %v1813
    %v1838 = vadd.f32 %v1777, %v1813
    %v1839 = vadd.f32 %v1779, %v1813
    %v1840 = vadd.f32 %v1781, %v1813
    %v1841 = vadd.f32 %v1783, %v1813
    %v1842 = vadd.f32 %v1785, %v1813
    %v1843 = vadd.f32 %v1787, %v1813
    %v1844 = vadd.f32 %v1789, %v1813
    %v1845 = vadd.f32 %v1791, %v1813
    %v1846 = vadd.f32 %v1793, %v1813
    %v1847 = vadd.f32 %v1795, %v1813
    %v1848 = vadd.f32 %v1797, %v1813
    %v1849 = vadd.f32 %v1799, %v1813
    %v1850 = vadd.f32 %v1801, %v1813
    %v1851 = vadd.f32 %v1803, %v1813
    %v1852 = vadd.f32 %v1807, %v1813
    %v1853 = vld [vmem:[#allocation2] sm:$0x1]
    %vm1854 = vcmask 7168
    %v1855 = vsel %vm1854, %v1815, -inf
    %v1856 = vsel %vm1854, %v1816, -inf
    %v1857 = vsel %vm1854, %v1817, -inf
    %v1858 = vsel %vm1854, %v1818, -inf
    %v1859 = vsel %vm1854, %v1819, -inf
    %v1860 = vmax.f32 %v1855, %v1859
    %v1861 = vsel %vm1854, %v1820, -inf
    %v1862 = vmax.f32 %v1856, %v1861
    %v1863 = vsel %vm1854, %v1821, -inf
    %v1864 = vmax.f32 %v1857, %v1863
    %v1865 = vsel %vm1854, %v1822, -inf
    %v1866 = vmax.f32 %v1858, %v1865
    %v1867 = vsel %vm1854, %v1823, -inf
    %v1868 = vmax.f32 %v1860, %v1867
    %v1869 = vsel %vm1854, %v1824, -inf
    %v1870 = vmax.f32 %v1862, %v1869
    %v1871 = vsel %vm1854, %v1825, -inf
    %v1872 = vmax.f32 %v1864, %v1871
    %v1873 = vsel %vm1854, %v1826, -inf
    %v1874 = vmax.f32 %v1866, %v1873
    %v1875 = vsel %vm1854, %v1827, -inf
    %v1876 = vmax.f32 %v1868, %v1875
    %v1877 = vsel %vm1854, %v1828, -inf
    %v1878 = vmax.f32 %v1870, %v1877
    %v1879 = vsel %vm1854, %v1829, -inf
    %v1880 = vmax.f32 %v1872, %v1879
    %v1881 = vsel %vm1854, %v1830, -inf
    %v1882 = vmax.f32 %v1874, %v1881
    %v1883 = vsel %vm1854, %v1831, -inf
    %v1884 = vmax.f32 %v1876, %v1883
    %v1885 = vsel %vm1854, %v1832, -inf
    %v1886 = vmax.f32 %v1878, %v1885
    %v1887 = vsel %vm1854, %v1833, -inf
    %v1888 = vmax.f32 %v1880, %v1887
    %v1889 = vsel %vm1854, %v1834, -inf
    %v1890 = vmax.f32 %v1882, %v1889
    %v1891 = vsel %vm1854, %v1835, -inf
    %v1892 = vmax.f32 %v1884, %v1891
    %v1893 = vsel %vm1854, %v1836, -inf
    %v1894 = vmax.f32 %v1886, %v1893
    %v1895 = vsel %vm1854, %v1837, -inf
    %v1896 = vmax.f32 %v1888, %v1895
    %v1897 = vsel %vm1854, %v1838, -inf
    %v1898 = vmax.f32 %v1890, %v1897
    %v1899 = vsel %vm1854, %v1839, -inf
    %v1900 = vmax.f32 %v1892, %v1899
    %v1901 = vsel %vm1854, %v1840, -inf
    %v1902 = vmax.f32 %v1894, %v1901
    %v1903 = vsel %vm1854, %v1841, -inf
    %v1904 = vmax.f32 %v1896, %v1903
    %v1905 = vsel %vm1854, %v1842, -inf
    %v1906 = vmax.f32 %v1898, %v1905
    %v1907 = vsel %vm1854, %v1843, -inf
    %v1908 = vmax.f32 %v1900, %v1907
    %v1909 = vsel %vm1854, %v1844, -inf
    %v1910 = vmax.f32 %v1902, %v1909
    %v1911 = vsel %vm1854, %v1845, -inf
    %v1912 = vmax.f32 %v1904, %v1911
    %v1913 = vsel %vm1854, %v1846, -inf
    %v1914 = vmax.f32 %v1906, %v1913
    %v1915 = vsel %vm1854, %v1847, -inf
    %v1916 = vmax.f32 %v1908, %v1915
    %v1917 = vsel %vm1854, %v1848, -inf
    %v1918 = vmax.f32 %v1910, %v1917
    %v1919 = vsel %vm1854, %v1849, -inf
    %v1920 = vmax.f32 %v1912, %v1919
    %v1921 = vsel %vm1854, %v1850, -inf
    %v1922 = vmax.f32 %v1914, %v1921
    %v1923 = vsel %vm1854, %v1851, -inf
    %v1924 = vmax.f32 %v1916, %v1923
    %vm1925 = vcmask 3072
    %v1926 = vsel %vm1925, %v1852, -inf
    %v1927 = vmax.f32 %v1918, %v1926
    %v1928 = vmax.f32 %v1924, %v1927
    %v1929 = vmax.f32 %v1920, %v1922
    %v1930 = vmax.f32 %v1928, %v1929
    %v1931 = vrot.slane %v1930, 4
    %v1932 = vmax.f32 %v1930, %v1931
    %v1933 = vrot.slane %v1932, 2
    %v1934 = vmax.f32 %v1932, %v1933
    %v1935 = vrot.slane %v1934, 1
    %v1936 = vmax.f32 %v1934, %v1935
    %v1937 = vmax.f32 %v1853, %v1936
    %v1938 = vsub.f32 %v1853, %v1937
    %v1939 = vmul.f32 %v1938, 1.442695
    %v1940 = vpow.pop %v1939
    %v1942 = vlaneseq
    %v1943 = vshrl.u32 %v1942, 7
    %v1944 = vsub.s32 0, %v1943
    %v1945 = vrot.slane %v1937, %v1944
    %v1947 = vsub.f32 %v1815, %v1945
    %v1948 = vsub.f32 %v1816, %v1945
    %v1949 = vsub.f32 %v1817, %v1945
    %v1950 = vsub.f32 %v1818, %v1945
    %v1951 = vsub.f32 %v1819, %v1945
    %v1952 = vsub.f32 %v1820, %v1945
    %v1953 = vsub.f32 %v1821, %v1945
    %v1954 = vsub.f32 %v1822, %v1945
    %v1955 = vsub.f32 %v1823, %v1945
    %v1956 = vsub.f32 %v1824, %v1945
    %v1957 = vsub.f32 %v1825, %v1945
    %v1958 = vsub.f32 %v1826, %v1945
    %v1959 = vsub.f32 %v1827, %v1945
    %v1960 = vsub.f32 %v1828, %v1945
    %v1961 = vsub.f32 %v1829, %v1945
    %v1962 = vsub.f32 %v1830, %v1945
    %v1963 = vsub.f32 %v1831, %v1945
    %v1964 = vsub.f32 %v1832, %v1945
    %v1965 = vsub.f32 %v1833, %v1945
    %v1966 = vsub.f32 %v1834, %v1945
    %v1967 = vsub.f32 %v1835, %v1945
    %v1968 = vsub.f32 %v1836, %v1945
    %v1969 = vsub.f32 %v1837, %v1945
    %v1970 = vsub.f32 %v1838, %v1945
    %v1971 = vsub.f32 %v1839, %v1945
    %v1972 = vsub.f32 %v1840, %v1945
    %v1973 = vsub.f32 %v1841, %v1945
    %v1974 = vsub.f32 %v1842, %v1945
    %v1975 = vsub.f32 %v1843, %v1945
    %v1976 = vsub.f32 %v1844, %v1945
    %v1977 = vsub.f32 %v1845, %v1945
    %v1978 = vsub.f32 %v1846, %v1945
    %v1979 = vsub.f32 %v1847, %v1945
    %v1980 = vsub.f32 %v1848, %v1945
    %v1981 = vsub.f32 %v1849, %v1945
    %v1982 = vsub.f32 %v1850, %v1945
    %v1983 = vsub.f32 %v1851, %v1945
    %v1984 = vsub.f32 %v1852, %v1945
    %v1985 = vmul.f32 %v1947, 1.442695
    %v1986 = vpow.pop %v1985
    %v1987 = vmul.f32 %v1948, 1.442695
    %v1988 = vpow.pop %v1987
    %v1989 = vmul.f32 %v1949, 1.442695
    %v1990 = vpow.pop %v1989
    %v1991 = vmul.f32 %v1950, 1.442695
    %v1992 = vpow.pop %v1991
    %v1993 = vmul.f32 %v1951, 1.442695
    %v1994 = vpow.pop %v1993
    %v1995 = vmul.f32 %v1952, 1.442695
    %v1996 = vpow.pop %v1995
    %v1997 = vmul.f32 %v1953, 1.442695
    %v1998 = vpow.pop %v1997
    %v1999 = vmul.f32 %v1954, 1.442695
    %v2000 = vpow.pop %v1999
    %v2001 = vmul.f32 %v1955, 1.442695
    %v2002 = vpow.pop %v2001
    %v2003 = vmul.f32 %v1956, 1.442695
    %v2004 = vpow.pop %v2003
    %v2005 = vmul.f32 %v1957, 1.442695
    %v2006 = vpow.pop %v2005
    %v2007 = vmul.f32 %v1958, 1.442695
    %v2008 = vpow.pop %v2007
    %v2009 = vmul.f32 %v1959, 1.442695
    %v2010 = vpow.pop %v2009
    %v2011 = vmul.f32 %v1960, 1.442695
    %v2012 = vpow.pop %v2011
    %v2013 = vmul.f32 %v1961, 1.442695
    %v2014 = vpow.pop %v2013
    %v2015 = vmul.f32 %v1962, 1.442695
    %v2016 = vpow.pop %v2015
    %v2017 = vmul.f32 %v1963, 1.442695
    %v2018 = vpow.pop %v2017
    %v2019 = vmul.f32 %v1964, 1.442695
    %v2020 = vpow.pop %v2019
    %v2021 = vmul.f32 %v1965, 1.442695
    %v2022 = vpow.pop %v2021
    %v2023 = vmul.f32 %v1966, 1.442695
    %v2024 = vpow.pop %v2023
    %v2025 = vmul.f32 %v1967, 1.442695
    %v2026 = vpow.pop %v2025
    %v2027 = vmul.f32 %v1968, 1.442695
    %v2028 = vpow.pop %v2027
    %v2029 = vmul.f32 %v1969, 1.442695
    %v2030 = vpow.pop %v2029
    %v2031 = vmul.f32 %v1970, 1.442695
    %v2032 = vpow.pop %v2031
    %v2033 = vmul.f32 %v1971, 1.442695
    %v2034 = vpow.pop %v2033
    %v2035 = vmul.f32 %v1972, 1.442695
    %v2036 = vpow.pop %v2035
    %v2037 = vmul.f32 %v1973, 1.442695
    %v2038 = vpow.pop %v2037
    %v2039 = vmul.f32 %v1974, 1.442695
    %v2040 = vpow.pop %v2039
    %v2041 = vmul.f32 %v1975, 1.442695
    %v2042 = vpow.pop %v2041
    %v2043 = vmul.f32 %v1976, 1.442695
    %v2044 = vpow.pop %v2043
    %v2045 = vmul.f32 %v1977, 1.442695
    %v2046 = vpow.pop %v2045
    %v2047 = vmul.f32 %v1978, 1.442695
    %v2048 = vpow.pop %v2047
    %v2049 = vmul.f32 %v1979, 1.442695
    %v2050 = vpow.pop %v2049
    %v2051 = vmul.f32 %v1980, 1.442695
    %v2052 = vpow.pop %v2051
    %v2053 = vmul.f32 %v1981, 1.442695
    %v2054 = vpow.pop %v2053
    %v2055 = vmul.f32 %v1982, 1.442695
    %v2056 = vpow.pop %v2055
    %v2057 = vmul.f32 %v1983, 1.442695
    %v2058 = vpow.pop %v2057
    %v2059 = vmul.f32 %v1984, 1.442695
    %v2060 = vpow.pop %v2059
    %v2061 = vld [vmem:[#allocation3] sm:$0x1]
    %v2062 = vmul.f32 %v1940, %v2061
    %v2063 = vsel %vm1854, %v1986, 0.0
    %v2064 = vsel %vm1854, %v1988, 0.0
    %v2065 = vadd.f32 %v2063, %v2064
    %v2066 = vsel %vm1854, %v1990, 0.0
    %v2067 = vadd.f32 %v2065, %v2066
    %v2068 = vsel %vm1854, %v1992, 0.0
    %v2069 = vadd.f32 %v2067, %v2068
    %v2070 = vsel %vm1854, %v1994, 0.0
    %v2071 = vadd.f32 %v2069, %v2070
    %v2072 = vsel %vm1854, %v1996, 0.0
    %v2073 = vadd.f32 %v2071, %v2072
    %v2074 = vsel %vm1854, %v1998, 0.0
    %v2075 = vadd.f32 %v2073, %v2074
    %v2076 = vsel %vm1854, %v2000, 0.0
    %v2077 = vadd.f32 %v2075, %v2076
    %v2078 = vsel %vm1854, %v2002, 0.0
    %v2079 = vadd.f32 %v2077, %v2078
    %v2080 = vsel %vm1854, %v2004, 0.0
    %v2081 = vadd.f32 %v2079, %v2080
    %v2082 = vsel %vm1854, %v2006, 0.0
    %v2083 = vadd.f32 %v2081, %v2082
    %v2084 = vsel %vm1854, %v2008, 0.0
    %v2085 = vadd.f32 %v2083, %v2084
    %v2086 = vsel %vm1854, %v2010, 0.0
    %v2087 = vadd.f32 %v2085, %v2086
    %v2088 = vsel %vm1854, %v2012, 0.0
    %v2089 = vadd.f32 %v2087, %v2088
    %v2090 = vsel %vm1854, %v2014, 0.0
    %v2091 = vadd.f32 %v2089, %v2090
    %v2092 = vsel %vm1854, %v2016, 0.0
    %v2093 = vadd.f32 %v2091, %v2092
    %v2094 = vsel %vm1854, %v2018, 0.0
    %v2095 = vadd.f32 %v2093, %v2094
    %v2096 = vsel %vm1854, %v2020, 0.0
    %v2097 = vadd.f32 %v2095, %v2096
    %v2098 = vsel %vm1854, %v2022, 0.0
    %v2099 = vadd.f32 %v2097, %v2098
    %v2100 = vsel %vm1854, %v2024, 0.0
    %v2101 = vadd.f32 %v2099, %v2100
    %v2102 = vsel %vm1854, %v2026, 0.0
    %v2103 = vadd.f32 %v2101, %v2102
    %v2104 = vsel %vm1854, %v2028, 0.0
    %v2105 = vadd.f32 %v2103, %v2104
    %v2106 = vsel %vm1854, %v2030, 0.0
    %v2107 = vadd.f32 %v2105, %v2106
    %v2108 = vsel %vm1854, %v2032, 0.0
    %v2109 = vadd.f32 %v2107, %v2108
    %v2110 = vsel %vm1854, %v2034, 0.0
    %v2111 = vadd.f32 %v2109, %v2110
    %v2112 = vsel %vm1854, %v2036, 0.0
    %v2113 = vadd.f32 %v2111, %v2112
    %v2114 = vsel %vm1854, %v2038, 0.0
    %v2115 = vadd.f32 %v2113, %v2114
    %v2116 = vsel %vm1854, %v2040, 0.0
    %v2117 = vadd.f32 %v2115, %v2116
    %v2118 = vsel %vm1854, %v2042, 0.0
    %v2119 = vadd.f32 %v2117, %v2118
    %v2120 = vsel %vm1854, %v2044, 0.0
    %v2121 = vadd.f32 %v2119, %v2120
    %v2122 = vsel %vm1854, %v2046, 0.0
    %v2123 = vadd.f32 %v2121, %v2122
    %v2124 = vsel %vm1854, %v2048, 0.0
    %v2125 = vadd.f32 %v2123, %v2124
    %v2126 = vsel %vm1854, %v2050, 0.0
    %v2127 = vadd.f32 %v2125, %v2126
    %v2128 = vsel %vm1854, %v2052, 0.0
    %v2129 = vadd.f32 %v2127, %v2128
    %v2130 = vsel %vm1854, %v2054, 0.0
    %v2131 = vadd.f32 %v2129, %v2130
    %v2132 = vsel %vm1854, %v2056, 0.0
    %v2133 = vadd.f32 %v2131, %v2132
    %v2134 = vsel %vm1854, %v2058, 0.0
    %v2135 = vadd.f32 %v2133, %v2134
    %v2136 = vsel %vm1925, %v2060, 0.0
    %v2137 = vadd.f32 %v2135, %v2136
    %v2138 = vrot.slane %v2137, 4
    %v2139 = vadd.f32 %v2137, %v2138
    %v2140 = vrot.slane %v2139, 2
    %v2141 = vadd.f32 %v2139, %v2140
    %v2142 = vrot.slane %v2141, 1
    %v2143 = vadd.f32 %v2141, %v2142
    %v2144 = vadd.f32 %v2062, %v2143
    %vm2145 = vcmask 0
    %2146 = vst.msk [vmem:[#allocation3] sm:$0x1] %vm2145, %v2144
    %2147 = vxpose.xlu0.b32.start [1/16] %v1940, 128
    %2148 = vxpose.xlu0.b32.cont [2/16] 0.0, 128
    %2149 = vxpose.xlu0.b32.cont [3/16] 0.0, 128
    %2150 = vxpose.xlu0.b32.cont [4/16] 0.0, 128
    %2151 = vxpose.xlu0.b32.cont [5/16] 0.0, 128
    %2152 = vxpose.xlu0.b32.cont [6/16] 0.0, 128
    %2153 = vxpose.xlu0.b32.cont [7/16] 0.0, 128
    %2154 = vxpose.xlu0.b32.cont [8/16] 0.0, 128
    %2155 = vxpose.xlu0.b32.cont [9/16] 0.0, 128
    %2156 = vxpose.xlu0.b32.cont [10/16] 0.0, 128
    %2157 = vxpose.xlu0.b32.cont [11/16] 0.0, 128
    %2158 = vxpose.xlu0.b32.cont [12/16] 0.0, 128
    %2159 = vxpose.xlu0.b32.cont [13/16] 0.0, 128
    %2160 = vxpose.xlu0.b32.cont [14/16] 0.0, 128
    %2161 = vxpose.xlu0.b32.cont [15/16] 0.0, 128
    %2162 = vxpose.xlu0.b32.end [16/16] 0.0, 128
    %v2163 = vpop.trf.xlu0
    %v2164 = vpop.trf.xlu0
    %v2165 = vpop.trf.xlu0
    %v2166 = vpop.trf.xlu0
    %v2167 = vpop.trf.xlu0
    %v2168 = vpop.trf.xlu0
    %v2169 = vpop.trf.xlu0
    %v2170 = vpop.trf.xlu0
    %v2171 = vpop.trf.xlu0
    %v2172 = vpop.trf.xlu0
    %v2173 = vpop.trf.xlu0
    %v2174 = vpop.trf.xlu0
    %v2175 = vpop.trf.xlu0
    %v2176 = vpop.trf.xlu0
    %v2177 = vpop.trf.xlu0
    %v2178 = vpop.trf.xlu0
    %v2179 = vld [vmem:[#allocation4] sm:$0xf]
    %2181 = vset.pattern.permute.xlu0 0
    %2182 = vperm.xlu0 %2181, %v2163
    %v2183 = vpop.permute.xlu0 %2182
    %v2186 = vlaneseq
    %v2187 = vshrl.u32 %v2186, 7
    %v2188 = vsub.s32 0, %v2187
    %v2189 = vrot.slane %v2179, %v2188
    %v2190 = vlaneseq
    %v2191 = vshrl.u32 %v2190, 7
    %v2192 = vsub.s32 1, %v2191
    %v2193 = vrot.slane %v2179, %v2192
    %v2194 = vlaneseq
    %v2195 = vshrl.u32 %v2194, 7
    %v2196 = vsub.s32 2, %v2195
    %v2197 = vrot.slane %v2179, %v2196
    %v2198 = vlaneseq
    %v2199 = vshrl.u32 %v2198, 7
    %v2200 = vsub.s32 3, %v2199
    %v2201 = vrot.slane %v2179, %v2200
    %v2206 = vmul.f32 %v2183, %v2189
    %v2207 = vmul.f32 %v2183, %v2193
    %v2208 = vmul.f32 %v2183, %v2197
    %v2209 = vmul.f32 %v2183, %v2201
    %v2210 = vpack.c.bf16 %v1988, %v1986
    %v2211 = vpack.c.bf16 %v1992, %v1990
    %v2212 = vpack.c.bf16 %v1996, %v1994
    %v2213 = vpack.c.bf16 %v2000, %v1998
    %v2214 = vpack.c.bf16 %v2004, %v2002
    %v2215 = vpack.c.bf16 %v2008, %v2006
    %v2216 = vpack.c.bf16 %v2012, %v2010
    %v2217 = vpack.c.bf16 %v2016, %v2014
    %v2218 = vpack.c.bf16 %v2020, %v2018
    %v2219 = vpack.c.bf16 %v2024, %v2022
    %v2220 = vpack.c.bf16 %v2028, %v2026
    %v2221 = vpack.c.bf16 %v2032, %v2030
    %v2222 = vpack.c.bf16 %v2036, %v2034
    %v2223 = vpack.c.bf16 %v2040, %v2038
    %v2224 = vpack.c.bf16 %v2044, %v2042
    %v2225 = vpack.c.bf16 %v2048, %v2046
    %v2226 = vpack.c.bf16 %v2052, %v2050
    %v2227 = vpack.c.bf16 %v2056, %v2054
    %v2228 = vpack.c.bf16 %v2060, %v2058
    %2229 = vxpose.xlu0.c.b16.start [1/8] %v2210, 128
    %2230 = vxpose.xlu0.c.b16.cont [2/8] %v2211, 128
    %2231 = vxpose.xlu0.c.b16.cont [3/8] %v2212, 128
    %2232 = vxpose.xlu0.c.b16.cont [4/8] %v2213, 128
    %2233 = vxpose.xlu0.c.b16.cont [5/8] %v2214, 128
    %2234 = vxpose.xlu0.c.b16.cont [6/8] %v2215, 128
    %2235 = vxpose.xlu0.c.b16.cont [7/8] %v2216, 128
    %2236 = vxpose.xlu0.c.b16.end [8/8] %v2217, 128
    %v2237 = vpop.trf.xlu0
    %v2238 = vpop.trf.xlu0
    %v2239 = vpop.trf.xlu0
    %v2240 = vpop.trf.xlu0
    %v2241 = vpop.trf.xlu0
    %v2242 = vpop.trf.xlu0
    %v2243 = vpop.trf.xlu0
    %v2244 = vpop.trf.xlu0
    %2245 = vxpose.xlu0.c.b16.start [1/8] %v2218, 128
    %2246 = vxpose.xlu0.c.b16.cont [2/8] %v2219, 128
    %2247 = vxpose.xlu0.c.b16.cont [3/8] %v2220, 128
    %2248 = vxpose.xlu0.c.b16.cont [4/8] %v2221, 128
    %2249 = vxpose.xlu0.c.b16.cont [5/8] %v2222, 128
    %2250 = vxpose.xlu0.c.b16.cont [6/8] %v2223, 128
    %2251 = vxpose.xlu0.c.b16.cont [7/8] %v2224, 128
    %2252 = vxpose.xlu0.c.b16.end [8/8] %v2225, 128
    %v2253 = vpop.trf.xlu0
    %v2254 = vpop.trf.xlu0
    %v2255 = vpop.trf.xlu0
    %v2256 = vpop.trf.xlu0
    %v2257 = vpop.trf.xlu0
    %v2258 = vpop.trf.xlu0
    %v2259 = vpop.trf.xlu0
    %v2260 = vpop.trf.xlu0
    %2261 = vxpose.xlu0.c.b16.start [1/8] %v2226, 128
    %2262 = vxpose.xlu0.c.b16.cont [2/8] %v2227, 128
    %2263 = vxpose.xlu0.c.b16.cont [3/8] %v2228, 128
    %2264 = vxpose.xlu0.c.b16.cont [4/8] 0, 128
    %2265 = vxpose.xlu0.c.b16.cont [5/8] 0, 128
    %2266 = vxpose.xlu0.c.b16.cont [6/8] 0, 128
    %2267 = vxpose.xlu0.c.b16.cont [7/8] 0, 128
    %2268 = vxpose.xlu0.c.b16.end [8/8] 0, 128
    %v2269 = vpop.trf.xlu0
    %v2270 = vpop.trf.xlu0
    %v2271 = vpop.trf.xlu0
    %v2272 = vpop.trf.xlu0
    %v2273 = vpop.trf.xlu0
    %v2274 = vpop.trf.xlu0
    %v2275 = vpop.trf.xlu0
    %v2276 = vpop.trf.xlu0
    %vm2277 = vcmask 359424
    %v2279 = vsel %vm2277, %v2269, 0
    %vm2281 = vcmask 1045504
    %v2283 = vsel %vm2281, %v535, 0
    %v2286 = vsel %vm2281, %v536, 0
    %v2289 = vsel %vm2281, %v537, 0
    %v2292 = vsel %vm2281, %v538, 0
    %2294 = vmatprep.subr.bf16.mxu0 %v464
    %2295 = vmatpush1.bf16.msra.mxu0 %v463
    %2296 = vmatprep.subr.bf16.mxu0 %v468
    %2297 = vmatpush1.bf16.msra.mxu0 %v467
    %2298 = vmatprep.subr.bf16.mxu0 %v472
    %2299 = vmatpush1.bf16.msra.mxu0 %v471
    %2300 = vmatprep.subr.bf16.mxu0 %v476
    %2301 = vmatpush1.bf16.msra.mxu0 %v475
    %2302 = vmatprep.subr.bf16.mxu0 %v480
    %2303 = vmatpush1.bf16.msra.mxu0 %v479
    %2304 = vmatprep.subr.bf16.mxu0 %v484
    %2305 = vmatpush1.bf16.msra.mxu0 %v483
    %2306 = vmatprep.subr.bf16.mxu0 %v488
    %2307 = vmatpush1.bf16.msra.mxu0 %v487
    %2308 = vmatprep.subr.bf16.mxu0 %v492
    %2309 = vmatpush1.bf16.msra.mxu0 %v491
    %2310 = vmatprep.subr.bf16.mxu0 %v496
    %2311 = vmatpush1.bf16.msra.mxu0 %v495
    %2312 = vmatprep.subr.bf16.mxu0 %v500
    %2313 = vmatpush1.bf16.msra.mxu0 %v499
    %2314 = vmatprep.subr.bf16.mxu0 %v504
    %2315 = vmatpush1.bf16.msra.mxu0 %v503
    %2316 = vmatprep.subr.bf16.mxu0 %v508
    %2317 = vmatpush1.bf16.msra.mxu0 %v507
    %2318 = vmatprep.subr.bf16.mxu0 %v512
    %2319 = vmatpush1.bf16.msra.mxu0 %v511
    %2320 = vmatprep.subr.bf16.mxu0 %v516
    %2321 = vmatpush1.bf16.msra.mxu0 %v515
    %2322 = vmatprep.subr.bf16.mxu0 %v520
    %2323 = vmatpush1.bf16.msra.mxu0 %v519
    %2324 = vmatprep.subr.bf16.mxu0 %v524
    %2325 = vmatpush1.bf16.msra.mxu0 %v523
    %2326 = vmatprep.mubr.bf16.mxu0 %v2253
    %2327 = vmatmul.mubr.bf16.gmra.mrb[0].mxu0 %v2237
    %v2328 = vpop.f32.mrb[0].mxu0
    %v2329 = vadd.f32 0.0, %v2328
    %v2330 = vpop.f32.mrb[0].mxu0
    %v2331 = vadd.f32 0.0, %v2330
    %v2332 = vpop.f32.mrb[0].mxu0
    %v2333 = vpop.f32.mrb[0].mxu0
    %2334 = vdwg.mxu0
    %2335 = vmatprep.subr.bf16.mxu0 %v528
    %2336 = vmatpush1.bf16.msra.mxu0 %v527
    %2337 = vmatprep.subr.bf16.mxu0 %v532
    %2338 = vmatpush1.bf16.msra.mxu0 %v531
    %2339 = vmatprep.subr.bf16.mxu0 %v2286
    %2340 = vmatpush1.bf16.msra.mxu0 %v2283
    %2341 = vmatprep.subr.bf16.mxu0 0
    %2342 = vmatpush1.bf16.msra.mxu0 0
    %2343 = vmatprep.subr.bf16.mxu0 0
    %2344 = vmatpush1.bf16.msra.mxu0 0
    %2345 = vmatprep.subr.bf16.mxu0 0
    %2346 = vmatpush1.bf16.msra.mxu0 0
    %2347 = vmatprep.subr.bf16.mxu0 0
    %2348 = vmatpush1.bf16.msra.mxu0 0
    %2349 = vmatprep.subr.bf16.mxu0 0
    %2350 = vmatpush1.bf16.msra.mxu0 0
    %2351 = vmatprep.subr.bf16.mxu0 0
    %2352 = vmatpush1.bf16.msra.mxu0 0
    %2353 = vmatprep.subr.bf16.mxu0 0
    %2354 = vmatpush1.bf16.msra.mxu0 0
    %2355 = vmatprep.subr.bf16.mxu0 0
    %2356 = vmatpush1.bf16.msra.mxu0 0
    %2357 = vmatprep.subr.bf16.mxu0 0
    %2358 = vmatpush1.bf16.msra.mxu0 0
    %2359 = vmatprep.subr.bf16.mxu0 0
    %2360 = vmatpush1.bf16.msra.mxu0 0
    %2361 = vmatprep.subr.bf16.mxu0 0
    %2362 = vmatpush1.bf16.msra.mxu0 0
    %2363 = vmatprep.subr.bf16.mxu0 0
    %2364 = vmatpush1.bf16.msra.mxu0 0
    %2365 = vmatprep.subr.bf16.mxu0 0
    %2366 = vmatpush1.bf16.msra.mxu0 0
    %2367 = vmatprep.mubr.bf16.mxu0 0
    %2368 = vmatmul.mubr.bf16.gmra.mrb[0].mxu0 %v2279
    %v2369 = vpop.f32.mrb[0].mxu0
    %v2370 = vadd.f32 %v2329, %v2369
    %v2371 = vpop.f32.mrb[0].mxu0
    %v2372 = vadd.f32 %v2331, %v2371
    %v2373 = vpop.f32.mrb[0].mxu0
    %v2374 = vpop.f32.mrb[0].mxu0
    %2375 = vdwg.mxu0
    %2376 = vmatprep.subr.bf16.mxu0 %v466
    %2377 = vmatpush1.bf16.msra.mxu0 %v465
    %2378 = vmatprep.subr.bf16.mxu0 %v470
    %2379 = vmatpush1.bf16.msra.mxu0 %v469
    %2380 = vmatprep.subr.bf16.mxu0 %v474
    %2381 = vmatpush1.bf16.msra.mxu0 %v473
    %2382 = vmatprep.subr.bf16.mxu0 %v478
    %2383 = vmatpush1.bf16.msra.mxu0 %v477
    %2384 = vmatprep.subr.bf16.mxu0 %v482
    %2385 = vmatpush1.bf16.msra.mxu0 %v481
    %2386 = vmatprep.subr.bf16.mxu0 %v486
    %2387 = vmatpush1.bf16.msra.mxu0 %v485
    %2388 = vmatprep.subr.bf16.mxu0 %v490
    %2389 = vmatpush1.bf16.msra.mxu0 %v489
    %2390 = vmatprep.subr.bf16.mxu0 %v494
    %2391 = vmatpush1.bf16.msra.mxu0 %v493
    %2392 = vmatprep.subr.bf16.mxu0 %v498
    %2393 = vmatpush1.bf16.msra.mxu0 %v497
    %2394 = vmatprep.subr.bf16.mxu0 %v502
    %2395 = vmatpush1.bf16.msra.mxu0 %v501
    %2396 = vmatprep.subr.bf16.mxu0 %v506
    %2397 = vmatpush1.bf16.msra.mxu0 %v505
    %2398 = vmatprep.subr.bf16.mxu0 %v510
    %2399 = vmatpush1.bf16.msra.mxu0 %v509
    %2400 = vmatprep.subr.bf16.mxu0 %v514
    %2401 = vmatpush1.bf16.msra.mxu0 %v513
    %2402 = vmatprep.subr.bf16.mxu0 %v518
    %2403 = vmatpush1.bf16.msra.mxu0 %v517
    %2404 = vmatprep.subr.bf16.mxu0 %v522
    %2405 = vmatpush1.bf16.msra.mxu0 %v521
    %2406 = vmatprep.subr.bf16.mxu0 %v526
    %2407 = vmatpush1.bf16.msra.mxu0 %v525
    %2408 = vmatprep.mubr.bf16.mxu0 %v2253
    %2409 = vmatmul.mubr.bf16.gmra.mrb[0].mxu0 %v2237
    %v2410 = vpop.f32.mrb[0].mxu0
    %v2411 = vadd.f32 0.0, %v2410
    %v2412 = vpop.f32.mrb[0].mxu0
    %v2413 = vadd.f32 0.0, %v2412
    %v2414 = vpop.f32.mrb[0].mxu0
    %v2415 = vpop.f32.mrb[0].mxu0
    %2416 = vdwg.mxu0
    %2417 = vmatprep.subr.bf16.mxu0 %v530
    %2418 = vmatpush1.bf16.msra.mxu0 %v529
    %2419 = vmatprep.subr.bf16.mxu0 %v534
    %2420 = vmatpush1.bf16.msra.mxu0 %v533
    %2421 = vmatprep.subr.bf16.mxu0 %v2292
    %2422 = vmatpush1.bf16.msra.mxu0 %v2289
    %2423 = vmatprep.subr.bf16.mxu0 0
    %2424 = vmatpush1.bf16.msra.mxu0 0
    %2425 = vmatprep.subr.bf16.mxu0 0
    %2426 = vmatpush1.bf16.msra.mxu0 0
    %2427 = vmatprep.subr.bf16.mxu0 0
    %2428 = vmatpush1.bf16.msra.mxu0 0
    %2429 = vmatprep.subr.bf16.mxu0 0
    %2430 = vmatpush1.bf16.msra.mxu0 0
    %2431 = vmatprep.subr.bf16.mxu0 0
    %2432 = vmatpush1.bf16.msra.mxu0 0
    %2433 = vmatprep.subr.bf16.mxu0 0
    %2434 = vmatpush1.bf16.msra.mxu0 0
    %2435 = vmatprep.subr.bf16.mxu0 0
    %2436 = vmatpush1.bf16.msra.mxu0 0
    %2437 = vmatprep.subr.bf16.mxu0 0
    %2438 = vmatpush1.bf16.msra.mxu0 0
    %2439 = vmatprep.subr.bf16.mxu0 0
    %2440 = vmatpush1.bf16.msra.mxu0 0
    %2441 = vmatprep.subr.bf16.mxu0 0
    %2442 = vmatpush1.bf16.msra.mxu0 0
    %2443 = vmatprep.subr.bf16.mxu0 0
    %2444 = vmatpush1.bf16.msra.mxu0 0
    %2445 = vmatprep.subr.bf16.mxu0 0
    %2446 = vmatpush1.bf16.msra.mxu0 0
    %2447 = vmatprep.subr.bf16.mxu0 0
    %2448 = vmatpush1.bf16.msra.mxu0 0
    %2449 = vmatprep.mubr.bf16.mxu0 0
    %2450 = vmatmul.mubr.bf16.gmra.mrb[0].mxu0 %v2279
    %v2451 = vpop.f32.mrb[0].mxu0
    %v2452 = vadd.f32 %v2411, %v2451
    %v2453 = vpop.f32.mrb[0].mxu0
    %v2454 = vadd.f32 %v2413, %v2453
    %v2455 = vpop.f32.mrb[0].mxu0
    %v2456 = vpop.f32.mrb[0].mxu0
    %2457 = vdwg.mxu0
    %v2458 = vadd.f32 %v2206, %v2370
    %v2459 = vadd.f32 %v2207, %v2372
    %v2460 = vadd.f32 %v2208, %v2452
    %v2461 = vadd.f32 %v2209, %v2454
    %v2466 = vcombine.low %v2458, %v2459
    %v2467 = vcombine.low %v2460, %v2461
    %v2469 = vunpack.c.l.s4 1966171168
    %v2470 = vunpack.c.0.s8 %v2469
    %v2471 = vlaneseq
    %v2472 = vshrl.u32 %v2471, 7
    %v2473 = vsub.s32 %v2470, %v2472
    %v2474 = vrot.slane %v2466, %v2473
    %v2476 = vunpack.c.l.s4 1966171168
    %v2477 = vunpack.c.0.s8 %v2476
    %v2478 = vlaneseq
    %v2479 = vshrl.u32 %v2478, 7
    %v2480 = vsub.s32 %v2477, %v2479
    %v2481 = vrot.slane %v2467, %v2480
    %v2482 = vcombine.low %v2474, %v2481
    %v2484 = vunpack.c.l.s4 1966171168
    %v2485 = vunpack.c.0.s8 %v2484
    %v2486 = vlaneseq
    %v2487 = vshrl.u32 %v2486, 7
    %v2488 = vsub.s32 %v2485, %v2487
    %v2489 = vrot.slane %v2482, %v2488
    %v2491 = vlaneseq
    %vm2492 = vcmp.ge.s32.totalorder %v2491, 0
    %vm2493 = vcmp.lt.s32.totalorder %v2491, 512
    %vm2494 = vmand %vm2492, %vm2493
    %2495 = vst.msk [vmem:[#allocation4] sm:$0xf] %vm2494, %v2489
    %2496 = vst.msk [vmem:[#allocation2] sm:$0x1] %vm2145, %v1937
    // Predicated region
    $region50: #{attention_with_survival.1} parent=1 // pred_check
      %p2497 = pneg %p71
    $region51: #{attention_with_survival.1} parent=1 // pred_check_branch
      %2499 = sbr.rel (%p2497) target = $region53
    $region52: #{attention_with_survival.1} parent=1 // pred_region
      %v2500 = vld [vmem:[#allocation4] sm:$0xf]
      %v2501 = vld [vmem:[#allocation3] sm:$0x1]
      %2502 = vxpose.xlu0.b32.start [1/16] %v2501, 128
      %2503 = vxpose.xlu0.b32.cont [2/16] 0.0, 128
      %2504 = vxpose.xlu0.b32.cont [3/16] 0.0, 128
      %2505 = vxpose.xlu0.b32.cont [4/16] 0.0, 128
      %2506 = vxpose.xlu0.b32.cont [5/16] 0.0, 128
      %2507 = vxpose.xlu0.b32.cont [6/16] 0.0, 128
      %2508 = vxpose.xlu0.b32.cont [7/16] 0.0, 128
      %2509 = vxpose.xlu0.b32.cont [8/16] 0.0, 128
      %2510 = vxpose.xlu0.b32.cont [9/16] 0.0, 128
      %2511 = vxpose.xlu0.b32.cont [10/16] 0.0, 128
      %2512 = vxpose.xlu0.b32.cont [11/16] 0.0, 128
      %2513 = vxpose.xlu0.b32.cont [12/16] 0.0, 128
      %2514 = vxpose.xlu0.b32.cont [13/16] 0.0, 128
      %2515 = vxpose.xlu0.b32.cont [14/16] 0.0, 128
      %2516 = vxpose.xlu0.b32.cont [15/16] 0.0, 128
      %2517 = vxpose.xlu0.b32.end [16/16] 0.0, 128
      %v2518 = vpop.trf.xlu0
      %v2519 = vpop.trf.xlu0
      %v2520 = vpop.trf.xlu0
      %v2521 = vpop.trf.xlu0
      %v2522 = vpop.trf.xlu0
      %v2523 = vpop.trf.xlu0
      %v2524 = vpop.trf.xlu0
      %v2525 = vpop.trf.xlu0
      %v2526 = vpop.trf.xlu0
      %v2527 = vpop.trf.xlu0
      %v2528 = vpop.trf.xlu0
      %v2529 = vpop.trf.xlu0
      %v2530 = vpop.trf.xlu0
      %v2531 = vpop.trf.xlu0
      %v2532 = vpop.trf.xlu0
      %v2533 = vpop.trf.xlu0
      %2535 = vset.pattern.permute.xlu0 0
      %2536 = vperm.xlu0 %2535, %v2518
      %v2537 = vpop.permute.xlu0 %2536
      %v2538 = vlaneseq
      %v2539 = vshrl.u32 %v2538, 7
      %v2540 = vsub.s32 0, %v2539
      %v2541 = vrot.slane %v2537, %v2540
      %v2543 = vrcp.pop %v2541
      %v2544 = vmul.f32 %v2500, %v2543
      %v2545 = vld [vmem:[%s5] sm:$0xf]
      %v2546 = vmul.f32 %v2544, %v2545
      %v2548 = vlaneseq
      %v2549 = vshrl.u32 %v2548, 7
      %v2550 = vsub.s32 0, %v2549
      %v2551 = vrot.slane %v2546, %v2550
      %v2552 = vlaneseq
      %v2553 = vshrl.u32 %v2552, 7
      %v2554 = vsub.s32 1, %v2553
      %v2555 = vrot.slane %v2546, %v2554
      %v2556 = vlaneseq
      %v2557 = vshrl.u32 %v2556, 7
      %v2558 = vsub.s32 2, %v2557
      %v2559 = vrot.slane %v2546, %v2558
      %v2560 = vlaneseq
      %v2561 = vshrl.u32 %v2560, 7
      %v2562 = vsub.s32 3, %v2561
      %v2563 = vrot.slane %v2546, %v2562
      %vm2568 = vcmask 1040384
      %v2569 = vsel %vm2568, %v2551, 0.0
      %v2570 = vsel %vm2568, %v2555, 0.0
      %v2571 = vadd.f32 %v2569, %v2570
      %v2572 = vsel %vm2568, %v2559, 0.0
      %v2573 = vadd.f32 %v2571, %v2572
      %v2574 = vsel %vm2568, %v2563, 0.0
      %v2575 = vadd.f32 %v2573, %v2574
      %2576 = vadd.xlane.f32.xlu0 %v2575
      %v2577 = vpop.xlane.xlu0 %2576
      %v2578 = vld [vmem:[#allocation6] sm:$0x1]
      %v2579 = vadd.f32 %v2577, %v2578
      %v2580 = vld [vmem:[%s7] sm:$0xf]
      %v2581 = vmul.f32 %v2544, %v2580
      %v2583 = vlaneseq
      %v2584 = vshrl.u32 %v2583, 7
      %v2585 = vsub.s32 0, %v2584
      %v2586 = vrot.slane %v2581, %v2585
      %v2587 = vlaneseq
      %v2588 = vshrl.u32 %v2587, 7
      %v2589 = vsub.s32 1, %v2588
      %v2590 = vrot.slane %v2581, %v2589
      %v2591 = vlaneseq
      %v2592 = vshrl.u32 %v2591, 7
      %v2593 = vsub.s32 2, %v2592
      %v2594 = vrot.slane %v2581, %v2593
      %v2595 = vlaneseq
      %v2596 = vshrl.u32 %v2595, 7
      %v2597 = vsub.s32 3, %v2596
      %v2598 = vrot.slane %v2581, %v2597
      %v2603 = vsel %vm2568, %v2586, 0.0
      %v2604 = vsel %vm2568, %v2590, 0.0
      %v2605 = vadd.f32 %v2603, %v2604
      %v2606 = vsel %vm2568, %v2594, 0.0
      %v2607 = vadd.f32 %v2605, %v2606
      %v2608 = vsel %vm2568, %v2598, 0.0
      %v2609 = vadd.f32 %v2607, %v2608
      %2610 = vadd.xlane.f32.xlu0 %v2609
      %v2611 = vpop.xlane.xlu0 %2610
      %v2612 = vld [vmem:[#allocation7] sm:$0x1]
      %v2613 = vadd.f32 %v2611, %v2612
      %v2614 = vmax.f32 %v2613, 0.0
      %v2615 = vadd.f32 %v2614, 1e-06
      %2616 = vst.msk [vmem:[#allocation13] sm:$0x1] %vm2145, %v2579
      %2617 = vst.msk [vmem:[#allocation14] sm:$0x1] %vm2145, %v2615
    $region53: #{attention_with_survival.1} parent=1 // pred_fallthru
      _
    // Predicated region
    $region54: #{attention_with_survival.1} parent=1 // pred_check
      _
    $region55: #{attention_with_survival.1} parent=1 // pred_check_branch
      %2619 = sbr.rel (0) target = $region57
    $region56: #{attention_with_survival.1} parent=1 // pred_region
      %s2621 = ssub.s32 16, 16
      %2622 = vsyncadd [#allocation10], %s2621
      %s2624 = sshll.u32 [#allocation13], 4
      %s2625 = int_to_ptr.vmem [resolvable:$true] %s2624
      %2627 = dma.vmem_to_hbm [thread:$0]  %s2625, 16, %s9, [#allocation10]
    $region57: #{attention_with_survival.1} parent=1 // pred_fallthru
      _
    // Predicated region
    $region58: #{attention_with_survival.1} parent=1 // pred_check
      _
    $region59: #{attention_with_survival.1} parent=1 // pred_check_branch
      %2629 = sbr.rel (0) target = $region61
    $region60: #{attention_with_survival.1} parent=1 // pred_region
      %s2631 = ssub.s32 16, 16
      %2632 = vsyncadd [#allocation15], %s2631
      %s2634 = sshll.u32 [#allocation14], 4
      %s2635 = int_to_ptr.vmem [resolvable:$true] %s2634
      %2637 = dma.vmem_to_hbm [thread:$0]  %s2635, 16, %s10, [#allocation15]
    $region61: #{attention_with_survival.1} parent=1 // pred_fallthru
      _
    // Predicated region
    $region62: #{attention_with_survival.1} parent=1 // pred_check
      _
    $region63: #{attention_with_survival.1} parent=1 // pred_check_branch
      %2639 = sbr.rel (0) target = $region65
    $region64: #{attention_with_survival.1} parent=1 // pred_region
      %2640 = dma.done [#allocation10], 16
    $region65: #{attention_with_survival.1} parent=1 // pred_fallthru
      _
    // Predicated region
    $region66: #{attention_with_survival.1} parent=1 // pred_check
      _
    $region67: #{attention_with_survival.1} parent=1 // pred_check_branch
      %2642 = sbr.rel (0) target = $region69
    $region68: #{attention_with_survival.1} parent=1 // pred_region
      %2643 = dma.done [#allocation15], 16
    $region69: #{attention_with_survival.1} parent=1 // pred_fallthru
      _
    %2644 = vsyncpa [#allocation9], 1
    %2645 = vsyncpa [#allocation12], 1
    %2646 = vsyncpa [#allocation10], 1
    %2647 = vsyncpa [#allocation15], 1

</llo_original>
